<compile_context>
chip_gen: v6e
topology: v6e:2x2x1
jax: 0.10.0
libtpu: 0.0.40
codegen_flags: <defaults>
</compile_context>

<pallas_src>
import functools

import jax
import jax.numpy as jnp
from jax import lax
from jax.experimental import pallas as pl
from jax.experimental.pallas import tpu as pltpu


def _mha_kernel(x_ref, wqkv_ref, bqkv_ref, wo_ref, bo_ref, o_ref,
                *, num_heads, head_dim):
    """Single grid step: all heads unrolled, one lane-dense (S, E) store."""
    scale = jnp.float32(1.0 / (head_dim ** 0.5))

    # bf16 MXU inputs, f32 accumulation (full MXU rate on v5e/v6e/v7x).
    x = x_ref[...].astype(jnp.bfloat16)                        # (S, E)

    acc = None                                                 # (S, E) f32
    for h in range(num_heads):                                 # static unroll, H small
        wq = wqkv_ref[0, h].astype(jnp.bfloat16)               # (E, Dh)
        wk = wqkv_ref[1, h].astype(jnp.bfloat16)               # (E, Dh)
        wv = wqkv_ref[2, h].astype(jnp.bfloat16)               # (E, Dh)

        q = jnp.dot(x, wq, preferred_element_type=jnp.float32) + bqkv_ref[0, h]
        k = jnp.dot(x, wk, preferred_element_type=jnp.float32) + bqkv_ref[1, h]
        v = jnp.dot(x, wv, preferred_element_type=jnp.float32) + bqkv_ref[2, h]

        q = q * scale

        # scores = q @ k.T via transposed contraction -- no materialized k.T.
        s = lax.dot_general(q.astype(jnp.bfloat16), k.astype(jnp.bfloat16),
                            dimension_numbers=(((1,), (1,)), ((), ())),
                            preferred_element_type=jnp.float32)    # (S, S)

        # Softmax in f32 on VPU/EUP; approx reciprocal sits in the EUP slot.
        s = s - jnp.max(s, axis=-1, keepdims=True)
        p = jnp.exp(s)
        p = p * pl.reciprocal(jnp.sum(p, axis=-1, keepdims=True), approx=True)

        ctx = jnp.dot(p.astype(jnp.bfloat16), v.astype(jnp.bfloat16),
                      preferred_element_type=jnp.float32)          # (S, Dh)

        # Fold the out-projection per head: lane-dense (S, E) partial.
        partial = jnp.dot(ctx.astype(jnp.bfloat16),
                          wo_ref[h].astype(jnp.bfloat16),
                          preferred_element_type=jnp.float32)      # (S, E)
        acc = partial if acc is None else acc + partial

    o_ref[...] = (acc + bo_ref[...]).astype(o_ref.dtype)


def self_attention_pallas(x, w_qkv, b_qkv, w_out, b_out, *, num_heads):
    """x: (S, E); w_qkv: (E, 3E); b_qkv: (1, 3E); w_out: (E, E); b_out: (1, E).

    Weight layout convention is x @ W (already transposed vs torch's in_proj).
    """
    S, E = x.shape
    assert E % num_heads == 0
    head_dim = E // num_heads

    # Host-side (plain JAX) re-layout so the kernel never slices the lane axis:
    #   w_qkv (E, 3E) -> (3, H, E, Dh)   per-(q/k/v, head) projection blocks
    #   b_qkv (1, 3E) -> (3, H, 1, Dh)
    #   w_out (E, E)  -> (H, Dh, E)      per-head rows of the out-projection
    w_qkv_h = w_qkv.reshape(E, 3, num_heads, head_dim).transpose(1, 2, 0, 3)
    b_qkv_h = b_qkv.reshape(3, num_heads, 1, head_dim)
    w_out_h = w_out.reshape(num_heads, head_dim, E)
    b_out_2d = b_out.reshape(1, E)

    kernel = functools.partial(_mha_kernel,
                               num_heads=num_heads, head_dim=head_dim)

    return pl.pallas_call(
        kernel,
        out_shape=jax.ShapeDtypeStruct((S, E), x.dtype),
        grid=(1,),
        in_specs=[
            pl.BlockSpec((S, E), lambda i: (0, 0)),
            pl.BlockSpec((3, num_heads, E, head_dim), lambda i: (0, 0, 0, 0)),
            pl.BlockSpec((3, num_heads, 1, head_dim), lambda i: (0, 0, 0, 0)),
            pl.BlockSpec((num_heads, head_dim, E), lambda i: (0, 0, 0)),
            pl.BlockSpec((1, E), lambda i: (0, 0)),
        ],
        out_specs=pl.BlockSpec((S, E), lambda i: (0, 0)),
        compiler_params=pltpu.CompilerParams(
            dimension_semantics=("arbitrary",)),
    )(x, w_qkv_h, b_qkv_h, w_out_h, b_out_2d)


def self_attention_ref(x, w_qkv, b_qkv, w_out, b_out, *, num_heads):
    """Pure-JAX f32 reference mirroring torch.nn.MultiheadAttention (eval mode)."""
    S, E = x.shape
    head_dim = E // num_heads
    qkv = x @ w_qkv + b_qkv[0]
    q, k, v = qkv[:, :E], qkv[:, E:2 * E], qkv[:, 2 * E:]
    q = q.reshape(S, num_heads, head_dim).transpose(1, 0, 2)
    k = k.reshape(S, num_heads, head_dim).transpose(1, 0, 2)
    v = v.reshape(S, num_heads, head_dim).transpose(1, 0, 2)
    s = jnp.einsum("hqd,hkd->hqk", q, k) / jnp.sqrt(jnp.float32(head_dim))
    p = jax.nn.softmax(s, axis=-1)
    ctx = jnp.einsum("hqk,hkd->hqd", p, v).transpose(1, 0, 2).reshape(S, E)
    return ctx @ w_out + b_out[0]


if __name__ == "__main__":
    SEQ = 8
    EMBED = 32
    NUM_HEADS = 4
    # dropout_prob only affects training mode; identity at inference.

    key = jax.random.PRNGKey(0)
    k_x, k_wqkv, k_bqkv, k_wo, k_bo = jax.random.split(key, 5)

    x = jax.random.normal(k_x, (SEQ, EMBED), dtype=jnp.float32)

    # Shapes match nn.MultiheadAttention's in_proj_weight (3E,E) / in_proj_bias
    # (3E,) / out_proj (E,E)+(E,), stored pre-transposed for x @ W convention.
    w_qkv = jax.random.normal(k_wqkv, (EMBED, 3 * EMBED), dtype=jnp.float32) * 0.1
    b_qkv = jax.random.normal(k_bqkv, (1, 3 * EMBED), dtype=jnp.float32) * 0.1
    w_out = jax.random.normal(k_wo, (EMBED, EMBED), dtype=jnp.float32) * 0.1
    b_out = jax.random.normal(k_bo, (1, EMBED), dtype=jnp.float32) * 0.1

    out = self_attention_pallas(x, w_qkv, b_qkv, w_out, b_out, num_heads=NUM_HEADS)
    out = jax.block_until_ready(out)

    ref = self_attention_ref(x, w_qkv, b_qkv, w_out, b_out, num_heads=NUM_HEADS)
    assert out.shape == (SEQ, EMBED)
    # Tolerance loosened vs f32 reference: bf16 MXU inputs + approx reciprocal
    # give ~1e-2 relative error.
    max_err = float(jnp.max(jnp.abs(out - ref)))
    assert jnp.allclose(out, ref, atol=3e-2, rtol=3e-2), (
        f"mismatch vs reference (max abs err {max_err})")

    print("KERNEL_OK")
</pallas_src>

<mosaic_0001>
module attributes {stable_mosaic.version = 11 : i64} {
  func.func @_mha_kernel(%arg0: i32, %arg1: memref<8x32xf32, #tpu.memory_space<vmem>>, %arg2: memref<3x4x32x8xf32, #tpu.memory_space<vmem>>, %arg3: memref<3x4x1x8xf32, #tpu.memory_space<vmem>>, %arg4: memref<4x8x32xf32, #tpu.memory_space<vmem>>, %arg5: memref<1x32xf32, #tpu.memory_space<vmem>>, %arg6: memref<8x32xf32, #tpu.memory_space<vmem>>) attributes {dimension_semantics = [#tpu.dimension_semantics<arbitrary>], iteration_bounds = array<i64: 1>, scalar_prefetch = 0 : i64, scratch_operands = 0 : i64, tpu.core_type = #tpu.core_type<tc>, window_params = [{pipeline_mode = #tpu.pipeline_mode<synchronous>, transform_indices = @transform_0, window_bounds = array<i64: 8, 32>}, {pipeline_mode = #tpu.pipeline_mode<synchronous>, transform_indices = @transform_1, window_bounds = array<i64: 3, 4, 32, 8>}, {pipeline_mode = #tpu.pipeline_mode<synchronous>, transform_indices = @transform_2, window_bounds = array<i64: 3, 4, 1, 8>}, {pipeline_mode = #tpu.pipeline_mode<synchronous>, transform_indices = @transform_3, window_bounds = array<i64: 4, 8, 32>}, {pipeline_mode = #tpu.pipeline_mode<synchronous>, transform_indices = @transform_4, window_bounds = array<i64: 1, 32>}, {pipeline_mode = #tpu.pipeline_mode<synchronous>, transform_indices = @transform_5, window_bounds = array<i64: 8, 32>}]} {
    %c0 = arith.constant 0 : index
    %c0_0 = arith.constant 0 : index
    %0 = vector.load %arg1[%c0, %c0_0] : memref<8x32xf32, #tpu.memory_space<vmem>>, vector<8x32xf32>
    %1 = arith.truncf %0 : vector<8x32xf32> to vector<8x32xbf16>
    %c0_1 = arith.constant 0 : index
    %c0_2 = arith.constant 0 : index
    %c0_3 = arith.constant 0 : index
    %c0_4 = arith.constant 0 : index
    %2 = vector.load %arg2[%c0_1, %c0_2, %c0_3, %c0_4] : memref<3x4x32x8xf32, #tpu.memory_space<vmem>>, vector<1x1x32x8xf32>
    %3 = vector.shape_cast %2 : vector<1x1x32x8xf32> to vector<32x8xf32>
    %4 = arith.truncf %3 : vector<32x8xf32> to vector<32x8xbf16>
    %c1 = arith.constant 1 : index
    %c0_5 = arith.constant 0 : index
    %c0_6 = arith.constant 0 : index
    %c0_7 = arith.constant 0 : index
    %5 = vector.load %arg2[%c1, %c0_5, %c0_6, %c0_7] : memref<3x4x32x8xf32, #tpu.memory_space<vmem>>, vector<1x1x32x8xf32>
    %6 = vector.shape_cast %5 : vector<1x1x32x8xf32> to vector<32x8xf32>
    %7 = arith.truncf %6 : vector<32x8xf32> to vector<32x8xbf16>
    %c2 = arith.constant 2 : index
    %c0_8 = arith.constant 0 : index
    %c0_9 = arith.constant 0 : index
    %c0_10 = arith.constant 0 : index
    %8 = vector.load %arg2[%c2, %c0_8, %c0_9, %c0_10] : memref<3x4x32x8xf32, #tpu.memory_space<vmem>>, vector<1x1x32x8xf32>
    %9 = vector.shape_cast %8 : vector<1x1x32x8xf32> to vector<32x8xf32>
    %10 = arith.truncf %9 : vector<32x8xf32> to vector<32x8xbf16>
    %cst = arith.constant dense<0.000000e+00> : vector<8x8xf32>
    %11 = tpu.matmul %1, %4, %cst {dimension_numbers = #tpu.dot_dimension_numbers<[1], [0], [0], [1], [0, 0, 1, 1], [], []>} : vector<8x32xbf16>, vector<32x8xbf16>, vector<8x8xf32> -> vector<8x8xf32>
    %c0_11 = arith.constant 0 : index
    %c0_12 = arith.constant 0 : index
    %c0_13 = arith.constant 0 : index
    %c0_14 = arith.constant 0 : index
    %12 = vector.load %arg3[%c0_11, %c0_12, %c0_13, %c0_14] : memref<3x4x1x8xf32, #tpu.memory_space<vmem>>, vector<1x1x1x8xf32>
    %13 = vector.shape_cast %12 : vector<1x1x1x8xf32> to vector<1x8xf32>
    %14 = vector.broadcast %13 : vector<1x8xf32> to vector<8x8xf32>
    %15 = arith.addf %11, %14 : vector<8x8xf32>
    %cst_15 = arith.constant dense<0.000000e+00> : vector<8x8xf32>
    %16 = tpu.matmul %1, %7, %cst_15 {dimension_numbers = #tpu.dot_dimension_numbers<[1], [0], [0], [1], [0, 0, 1, 1], [], []>} : vector<8x32xbf16>, vector<32x8xbf16>, vector<8x8xf32> -> vector<8x8xf32>
    %c1_16 = arith.constant 1 : index
    %c0_17 = arith.constant 0 : index
    %c0_18 = arith.constant 0 : index
    %c0_19 = arith.constant 0 : index
    %17 = vector.load %arg3[%c1_16, %c0_17, %c0_18, %c0_19] : memref<3x4x1x8xf32, #tpu.memory_space<vmem>>, vector<1x1x1x8xf32>
    %18 = vector.shape_cast %17 : vector<1x1x1x8xf32> to vector<1x8xf32>
    %19 = vector.broadcast %18 : vector<1x8xf32> to vector<8x8xf32>
    %20 = arith.addf %16, %19 : vector<8x8xf32>
    %cst_20 = arith.constant dense<0.000000e+00> : vector<8x8xf32>
    %21 = tpu.matmul %1, %10, %cst_20 {dimension_numbers = #tpu.dot_dimension_numbers<[1], [0], [0], [1], [0, 0, 1, 1], [], []>} : vector<8x32xbf16>, vector<32x8xbf16>, vector<8x8xf32> -> vector<8x8xf32>
    %c2_21 = arith.constant 2 : index
    %c0_22 = arith.constant 0 : index
    %c0_23 = arith.constant 0 : index
    %c0_24 = arith.constant 0 : index
    %22 = vector.load %arg3[%c2_21, %c0_22, %c0_23, %c0_24] : memref<3x4x1x8xf32, #tpu.memory_space<vmem>>, vector<1x1x1x8xf32>
    %23 = vector.shape_cast %22 : vector<1x1x1x8xf32> to vector<1x8xf32>
    %24 = vector.broadcast %23 : vector<1x8xf32> to vector<8x8xf32>
    %25 = arith.addf %21, %24 : vector<8x8xf32>
    %cst_25 = arith.constant 0.353553385 : f32
    %26 = vector.broadcast %cst_25 : f32 to vector<8x8xf32>
    %27 = arith.mulf %15, %26 : vector<8x8xf32>
    %28 = arith.truncf %27 : vector<8x8xf32> to vector<8x8xbf16>
    %29 = arith.truncf %20 : vector<8x8xf32> to vector<8x8xbf16>
    %cst_26 = arith.constant dense<0.000000e+00> : vector<8x8xf32>
    %30 = tpu.matmul %28, %29, %cst_26 {dimension_numbers = #tpu.dot_dimension_numbers<[1], [1], [0], [0], [0, 0, 1, 0], [], []>} : vector<8x8xbf16>, vector<8x8xbf16>, vector<8x8xf32> -> vector<8x8xf32>
    %cst_27 = arith.constant dense<0xFF800000> : vector<8xf32>
    %31 = vector.multi_reduction <maximumf>, %30, %cst_27 [1] : vector<8x8xf32> to vector<8xf32>
    %32 = vector.shape_cast %31 : vector<8xf32> to vector<8x1xf32>
    %33 = vector.broadcast %32 : vector<8x1xf32> to vector<8x8xf32>
    %34 = arith.subf %30, %33 : vector<8x8xf32>
    %35 = math.exp %34 : vector<8x8xf32>
    %cst_28 = arith.constant dense<0.000000e+00> : vector<8xf32>
    %36 = vector.multi_reduction <add>, %35, %cst_28 [1] : vector<8x8xf32> to vector<8xf32>
    %37 = vector.shape_cast %36 : vector<8xf32> to vector<8x1xf32>
    %38 = tpu.reciprocal %37 {approx = true} : vector<8x1xf32> -> vector<8x1xf32>
    %39 = vector.broadcast %38 : vector<8x1xf32> to vector<8x8xf32>
    %40 = arith.mulf %35, %39 : vector<8x8xf32>
    %41 = arith.truncf %40 : vector<8x8xf32> to vector<8x8xbf16>
    %42 = arith.truncf %25 : vector<8x8xf32> to vector<8x8xbf16>
    %cst_29 = arith.constant dense<0.000000e+00> : vector<8x8xf32>
    %43 = tpu.matmul %41, %42, %cst_29 {dimension_numbers = #tpu.dot_dimension_numbers<[1], [0], [0], [1], [0, 0, 1, 1], [], []>} : vector<8x8xbf16>, vector<8x8xbf16>, vector<8x8xf32> -> vector<8x8xf32>
    %44 = arith.truncf %43 : vector<8x8xf32> to vector<8x8xbf16>
    %c0_30 = arith.constant 0 : index
    %c0_31 = arith.constant 0 : index
    %c0_32 = arith.constant 0 : index
    %45 = vector.load %arg4[%c0_30, %c0_31, %c0_32] : memref<4x8x32xf32, #tpu.memory_space<vmem>>, vector<1x8x32xf32>
    %46 = vector.shape_cast %45 : vector<1x8x32xf32> to vector<8x32xf32>
    %47 = arith.truncf %46 : vector<8x32xf32> to vector<8x32xbf16>
    %cst_33 = arith.constant dense<0.000000e+00> : vector<8x32xf32>
    %48 = tpu.matmul %44, %47, %cst_33 {dimension_numbers = #tpu.dot_dimension_numbers<[1], [0], [0], [1], [0, 0, 1, 1], [], []>} : vector<8x8xbf16>, vector<8x32xbf16>, vector<8x32xf32> -> vector<8x32xf32>
    %c0_34 = arith.constant 0 : index
    %c1_35 = arith.constant 1 : index
    %c0_36 = arith.constant 0 : index
    %c0_37 = arith.constant 0 : index
    %49 = vector.load %arg2[%c0_34, %c1_35, %c0_36, %c0_37] : memref<3x4x32x8xf32, #tpu.memory_space<vmem>>, vector<1x1x32x8xf32>
    %50 = vector.shape_cast %49 : vector<1x1x32x8xf32> to vector<32x8xf32>
    %51 = arith.truncf %50 : vector<32x8xf32> to vector<32x8xbf16>
    %c1_38 = arith.constant 1 : index
    %c1_39 = arith.constant 1 : index
    %c0_40 = arith.constant 0 : index
    %c0_41 = arith.constant 0 : index
    %52 = vector.load %arg2[%c1_38, %c1_39, %c0_40, %c0_41] : memref<3x4x32x8xf32, #tpu.memory_space<vmem>>, vector<1x1x32x8xf32>
    %53 = vector.shape_cast %52 : vector<1x1x32x8xf32> to vector<32x8xf32>
    %54 = arith.truncf %53 : vector<32x8xf32> to vector<32x8xbf16>
    %c2_42 = arith.constant 2 : index
    %c1_43 = arith.constant 1 : index
    %c0_44 = arith.constant 0 : index
    %c0_45 = arith.constant 0 : index
    %55 = vector.load %arg2[%c2_42, %c1_43, %c0_44, %c0_45] : memref<3x4x32x8xf32, #tpu.memory_space<vmem>>, vector<1x1x32x8xf32>
    %56 = vector.shape_cast %55 : vector<1x1x32x8xf32> to vector<32x8xf32>
    %57 = arith.truncf %56 : vector<32x8xf32> to vector<32x8xbf16>
    %cst_46 = arith.constant dense<0.000000e+00> : vector<8x8xf32>
    %58 = tpu.matmul %1, %51, %cst_46 {dimension_numbers = #tpu.dot_dimension_numbers<[1], [0], [0], [1], [0, 0, 1, 1], [], []>} : vector<8x32xbf16>, vector<32x8xbf16>, vector<8x8xf32> -> vector<8x8xf32>
    %c0_47 = arith.constant 0 : index
    %c1_48 = arith.constant 1 : index
    %c0_49 = arith.constant 0 : index
    %c0_50 = arith.constant 0 : index
    %59 = vector.load %arg3[%c0_47, %c1_48, %c0_49, %c0_50] : memref<3x4x1x8xf32, #tpu.memory_space<vmem>>, vector<1x1x1x8xf32>
    %60 = vector.shape_cast %59 : vector<1x1x1x8xf32> to vector<1x8xf32>
    %61 = vector.broadcast %60 : vector<1x8xf32> to vector<8x8xf32>
    %62 = arith.addf %58, %61 : vector<8x8xf32>
    %cst_51 = arith.constant dense<0.000000e+00> : vector<8x8xf32>
    %63 = tpu.matmul %1, %54, %cst_51 {dimension_numbers = #tpu.dot_dimension_numbers<[1], [0], [0], [1], [0, 0, 1, 1], [], []>} : vector<8x32xbf16>, vector<32x8xbf16>, vector<8x8xf32> -> vector<8x8xf32>
    %c1_52 = arith.constant 1 : index
    %c1_53 = arith.constant 1 : index
    %c0_54 = arith.constant 0 : index
    %c0_55 = arith.constant 0 : index
    %64 = vector.load %arg3[%c1_52, %c1_53, %c0_54, %c0_55] : memref<3x4x1x8xf32, #tpu.memory_space<vmem>>, vector<1x1x1x8xf32>
    %65 = vector.shape_cast %64 : vector<1x1x1x8xf32> to vector<1x8xf32>
    %66 = vector.broadcast %65 : vector<1x8xf32> to vector<8x8xf32>
    %67 = arith.addf %63, %66 : vector<8x8xf32>
    %cst_56 = arith.constant dense<0.000000e+00> : vector<8x8xf32>
    %68 = tpu.matmul %1, %57, %cst_56 {dimension_numbers = #tpu.dot_dimension_numbers<[1], [0], [0], [1], [0, 0, 1, 1], [], []>} : vector<8x32xbf16>, vector<32x8xbf16>, vector<8x8xf32> -> vector<8x8xf32>
    %c2_57 = arith.constant 2 : index
    %c1_58 = arith.constant 1 : index
    %c0_59 = arith.constant 0 : index
    %c0_60 = arith.constant 0 : index
    %69 = vector.load %arg3[%c2_57, %c1_58, %c0_59, %c0_60] : memref<3x4x1x8xf32, #tpu.memory_space<vmem>>, vector<1x1x1x8xf32>
    %70 = vector.shape_cast %69 : vector<1x1x1x8xf32> to vector<1x8xf32>
    %71 = vector.broadcast %70 : vector<1x8xf32> to vector<8x8xf32>
    %72 = arith.addf %68, %71 : vector<8x8xf32>
    %cst_61 = arith.constant 0.353553385 : f32
    %73 = vector.broadcast %cst_61 : f32 to vector<8x8xf32>
    %74 = arith.mulf %62, %73 : vector<8x8xf32>
    %75 = arith.truncf %74 : vector<8x8xf32> to vector<8x8xbf16>
    %76 = arith.truncf %67 : vector<8x8xf32> to vector<8x8xbf16>
    %cst_62 = arith.constant dense<0.000000e+00> : vector<8x8xf32>
    %77 = tpu.matmul %75, %76, %cst_62 {dimension_numbers = #tpu.dot_dimension_numbers<[1], [1], [0], [0], [0, 0, 1, 0], [], []>} : vector<8x8xbf16>, vector<8x8xbf16>, vector<8x8xf32> -> vector<8x8xf32>
    %cst_63 = arith.constant dense<0xFF800000> : vector<8xf32>
    %78 = vector.multi_reduction <maximumf>, %77, %cst_63 [1] : vector<8x8xf32> to vector<8xf32>
    %79 = vector.shape_cast %78 : vector<8xf32> to vector<8x1xf32>
    %80 = vector.broadcast %79 : vector<8x1xf32> to vector<8x8xf32>
    %81 = arith.subf %77, %80 : vector<8x8xf32>
    %82 = math.exp %81 : vector<8x8xf32>
    %cst_64 = arith.constant dense<0.000000e+00> : vector<8xf32>
    %83 = vector.multi_reduction <add>, %82, %cst_64 [1] : vector<8x8xf32> to vector<8xf32>
    %84 = vector.shape_cast %83 : vector<8xf32> to vector<8x1xf32>
    %85 = tpu.reciprocal %84 {approx = true} : vector<8x1xf32> -> vector<8x1xf32>
    %86 = vector.broadcast %85 : vector<8x1xf32> to vector<8x8xf32>
    %87 = arith.mulf %82, %86 : vector<8x8xf32>
    %88 = arith.truncf %87 : vector<8x8xf32> to vector<8x8xbf16>
    %89 = arith.truncf %72 : vector<8x8xf32> to vector<8x8xbf16>
    %cst_65 = arith.constant dense<0.000000e+00> : vector<8x8xf32>
    %90 = tpu.matmul %88, %89, %cst_65 {dimension_numbers = #tpu.dot_dimension_numbers<[1], [0], [0], [1], [0, 0, 1, 1], [], []>} : vector<8x8xbf16>, vector<8x8xbf16>, vector<8x8xf32> -> vector<8x8xf32>
    %91 = arith.truncf %90 : vector<8x8xf32> to vector<8x8xbf16>
    %c1_66 = arith.constant 1 : index
    %c0_67 = arith.constant 0 : index
    %c0_68 = arith.constant 0 : index
    %92 = vector.load %arg4[%c1_66, %c0_67, %c0_68] : memref<4x8x32xf32, #tpu.memory_space<vmem>>, vector<1x8x32xf32>
    %93 = vector.shape_cast %92 : vector<1x8x32xf32> to vector<8x32xf32>
    %94 = arith.truncf %93 : vector<8x32xf32> to vector<8x32xbf16>
    %cst_69 = arith.constant dense<0.000000e+00> : vector<8x32xf32>
    %95 = tpu.matmul %91, %94, %cst_69 {dimension_numbers = #tpu.dot_dimension_numbers<[1], [0], [0], [1], [0, 0, 1, 1], [], []>} : vector<8x8xbf16>, vector<8x32xbf16>, vector<8x32xf32> -> vector<8x32xf32>
    %96 = arith.addf %48, %95 : vector<8x32xf32>
    %c0_70 = arith.constant 0 : index
    %c2_71 = arith.constant 2 : index
    %c0_72 = arith.constant 0 : index
    %c0_73 = arith.constant 0 : index
    %97 = vector.load %arg2[%c0_70, %c2_71, %c0_72, %c0_73] : memref<3x4x32x8xf32, #tpu.memory_space<vmem>>, vector<1x1x32x8xf32>
    %98 = vector.shape_cast %97 : vector<1x1x32x8xf32> to vector<32x8xf32>
    %99 = arith.truncf %98 : vector<32x8xf32> to vector<32x8xbf16>
    %c1_74 = arith.constant 1 : index
    %c2_75 = arith.constant 2 : index
    %c0_76 = arith.constant 0 : index
    %c0_77 = arith.constant 0 : index
    %100 = vector.load %arg2[%c1_74, %c2_75, %c0_76, %c0_77] : memref<3x4x32x8xf32, #tpu.memory_space<vmem>>, vector<1x1x32x8xf32>
    %101 = vector.shape_cast %100 : vector<1x1x32x8xf32> to vector<32x8xf32>
    %102 = arith.truncf %101 : vector<32x8xf32> to vector<32x8xbf16>
    %c2_78 = arith.constant 2 : index
    %c2_79 = arith.constant 2 : index
    %c0_80 = arith.constant 0 : index
    %c0_81 = arith.constant 0 : index
    %103 = vector.load %arg2[%c2_78, %c2_79, %c0_80, %c0_81] : memref<3x4x32x8xf32, #tpu.memory_space<vmem>>, vector<1x1x32x8xf32>
    %104 = vector.shape_cast %103 : vector<1x1x32x8xf32> to vector<32x8xf32>
    %105 = arith.truncf %104 : vector<32x8xf32> to vector<32x8xbf16>
    %cst_82 = arith.constant dense<0.000000e+00> : vector<8x8xf32>
    %106 = tpu.matmul %1, %99, %cst_82 {dimension_numbers = #tpu.dot_dimension_numbers<[1], [0], [0], [1], [0, 0, 1, 1], [], []>} : vector<8x32xbf16>, vector<32x8xbf16>, vector<8x8xf32> -> vector<8x8xf32>
    %c0_83 = arith.constant 0 : index
    %c2_84 = arith.constant 2 : index
    %c0_85 = arith.constant 0 : index
    %c0_86 = arith.constant 0 : index
    %107 = vector.load %arg3[%c0_83, %c2_84, %c0_85, %c0_86] : memref<3x4x1x8xf32, #tpu.memory_space<vmem>>, vector<1x1x1x8xf32>
    %108 = vector.shape_cast %107 : vector<1x1x1x8xf32> to vector<1x8xf32>
    %109 = vector.broadcast %108 : vector<1x8xf32> to vector<8x8xf32>
    %110 = arith.addf %106, %109 : vector<8x8xf32>
    %cst_87 = arith.constant dense<0.000000e+00> : vector<8x8xf32>
    %111 = tpu.matmul %1, %102, %cst_87 {dimension_numbers = #tpu.dot_dimension_numbers<[1], [0], [0], [1], [0, 0, 1, 1], [], []>} : vector<8x32xbf16>, vector<32x8xbf16>, vector<8x8xf32> -> vector<8x8xf32>
    %c1_88 = arith.constant 1 : index
    %c2_89 = arith.constant 2 : index
    %c0_90 = arith.constant 0 : index
    %c0_91 = arith.constant 0 : index
    %112 = vector.load %arg3[%c1_88, %c2_89, %c0_90, %c0_91] : memref<3x4x1x8xf32, #tpu.memory_space<vmem>>, vector<1x1x1x8xf32>
    %113 = vector.shape_cast %112 : vector<1x1x1x8xf32> to vector<1x8xf32>
    %114 = vector.broadcast %113 : vector<1x8xf32> to vector<8x8xf32>
    %115 = arith.addf %111, %114 : vector<8x8xf32>
    %cst_92 = arith.constant dense<0.000000e+00> : vector<8x8xf32>
    %116 = tpu.matmul %1, %105, %cst_92 {dimension_numbers = #tpu.dot_dimension_numbers<[1], [0], [0], [1], [0, 0, 1, 1], [], []>} : vector<8x32xbf16>, vector<32x8xbf16>, vector<8x8xf32> -> vector<8x8xf32>
    %c2_93 = arith.constant 2 : index
    %c2_94 = arith.constant 2 : index
    %c0_95 = arith.constant 0 : index
    %c0_96 = arith.constant 0 : index
    %117 = vector.load %arg3[%c2_93, %c2_94, %c0_95, %c0_96] : memref<3x4x1x8xf32, #tpu.memory_space<vmem>>, vector<1x1x1x8xf32>
    %118 = vector.shape_cast %117 : vector<1x1x1x8xf32> to vector<1x8xf32>
    %119 = vector.broadcast %118 : vector<1x8xf32> to vector<8x8xf32>
    %120 = arith.addf %116, %119 : vector<8x8xf32>
    %cst_97 = arith.constant 0.353553385 : f32
    %121 = vector.broadcast %cst_97 : f32 to vector<8x8xf32>
    %122 = arith.mulf %110, %121 : vector<8x8xf32>
    %123 = arith.truncf %122 : vector<8x8xf32> to vector<8x8xbf16>
    %124 = arith.truncf %115 : vector<8x8xf32> to vector<8x8xbf16>
    %cst_98 = arith.constant dense<0.000000e+00> : vector<8x8xf32>
    %125 = tpu.matmul %123, %124, %cst_98 {dimension_numbers = #tpu.dot_dimension_numbers<[1], [1], [0], [0], [0, 0, 1, 0], [], []>} : vector<8x8xbf16>, vector<8x8xbf16>, vector<8x8xf32> -> vector<8x8xf32>
    %cst_99 = arith.constant dense<0xFF800000> : vector<8xf32>
    %126 = vector.multi_reduction <maximumf>, %125, %cst_99 [1] : vector<8x8xf32> to vector<8xf32>
    %127 = vector.shape_cast %126 : vector<8xf32> to vector<8x1xf32>
    %128 = vector.broadcast %127 : vector<8x1xf32> to vector<8x8xf32>
    %129 = arith.subf %125, %128 : vector<8x8xf32>
    %130 = math.exp %129 : vector<8x8xf32>
    %cst_100 = arith.constant dense<0.000000e+00> : vector<8xf32>
    %131 = vector.multi_reduction <add>, %130, %cst_100 [1] : vector<8x8xf32> to vector<8xf32>
    %132 = vector.shape_cast %131 : vector<8xf32> to vector<8x1xf32>
    %133 = tpu.reciprocal %132 {approx = true} : vector<8x1xf32> -> vector<8x1xf32>
    %134 = vector.broadcast %133 : vector<8x1xf32> to vector<8x8xf32>
    %135 = arith.mulf %130, %134 : vector<8x8xf32>
    %136 = arith.truncf %135 : vector<8x8xf32> to vector<8x8xbf16>
    %137 = arith.truncf %120 : vector<8x8xf32> to vector<8x8xbf16>
    %cst_101 = arith.constant dense<0.000000e+00> : vector<8x8xf32>
    %138 = tpu.matmul %136, %137, %cst_101 {dimension_numbers = #tpu.dot_dimension_numbers<[1], [0], [0], [1], [0, 0, 1, 1], [], []>} : vector<8x8xbf16>, vector<8x8xbf16>, vector<8x8xf32> -> vector<8x8xf32>
    %139 = arith.truncf %138 : vector<8x8xf32> to vector<8x8xbf16>
    %c2_102 = arith.constant 2 : index
    %c0_103 = arith.constant 0 : index
    %c0_104 = arith.constant 0 : index
    %140 = vector.load %arg4[%c2_102, %c0_103, %c0_104] : memref<4x8x32xf32, #tpu.memory_space<vmem>>, vector<1x8x32xf32>
    %141 = vector.shape_cast %140 : vector<1x8x32xf32> to vector<8x32xf32>
    %142 = arith.truncf %141 : vector<8x32xf32> to vector<8x32xbf16>
    %cst_105 = arith.constant dense<0.000000e+00> : vector<8x32xf32>
    %143 = tpu.matmul %139, %142, %cst_105 {dimension_numbers = #tpu.dot_dimension_numbers<[1], [0], [0], [1], [0, 0, 1, 1], [], []>} : vector<8x8xbf16>, vector<8x32xbf16>, vector<8x32xf32> -> vector<8x32xf32>
    %144 = arith.addf %96, %143 : vector<8x32xf32>
    %c0_106 = arith.constant 0 : index
    %c3 = arith.constant 3 : index
    %c0_107 = arith.constant 0 : index
    %c0_108 = arith.constant 0 : index
    %145 = vector.load %arg2[%c0_106, %c3, %c0_107, %c0_108] : memref<3x4x32x8xf32, #tpu.memory_space<vmem>>, vector<1x1x32x8xf32>
    %146 = vector.shape_cast %145 : vector<1x1x32x8xf32> to vector<32x8xf32>
    %147 = arith.truncf %146 : vector<32x8xf32> to vector<32x8xbf16>
    %c1_109 = arith.constant 1 : index
    %c3_110 = arith.constant 3 : index
    %c0_111 = arith.constant 0 : index
    %c0_112 = arith.constant 0 : index
    %148 = vector.load %arg2[%c1_109, %c3_110, %c0_111, %c0_112] : memref<3x4x32x8xf32, #tpu.memory_space<vmem>>, vector<1x1x32x8xf32>
    %149 = vector.shape_cast %148 : vector<1x1x32x8xf32> to vector<32x8xf32>
    %150 = arith.truncf %149 : vector<32x8xf32> to vector<32x8xbf16>
    %c2_113 = arith.constant 2 : index
    %c3_114 = arith.constant 3 : index
    %c0_115 = arith.constant 0 : index
    %c0_116 = arith.constant 0 : index
    %151 = vector.load %arg2[%c2_113, %c3_114, %c0_115, %c0_116] : memref<3x4x32x8xf32, #tpu.memory_space<vmem>>, vector<1x1x32x8xf32>
    %152 = vector.shape_cast %151 : vector<1x1x32x8xf32> to vector<32x8xf32>
    %153 = arith.truncf %152 : vector<32x8xf32> to vector<32x8xbf16>
    %cst_117 = arith.constant dense<0.000000e+00> : vector<8x8xf32>
    %154 = tpu.matmul %1, %147, %cst_117 {dimension_numbers = #tpu.dot_dimension_numbers<[1], [0], [0], [1], [0, 0, 1, 1], [], []>} : vector<8x32xbf16>, vector<32x8xbf16>, vector<8x8xf32> -> vector<8x8xf32>
    %c0_118 = arith.constant 0 : index
    %c3_119 = arith.constant 3 : index
    %c0_120 = arith.constant 0 : index
    %c0_121 = arith.constant 0 : index
    %155 = vector.load %arg3[%c0_118, %c3_119, %c0_120, %c0_121] : memref<3x4x1x8xf32, #tpu.memory_space<vmem>>, vector<1x1x1x8xf32>
    %156 = vector.shape_cast %155 : vector<1x1x1x8xf32> to vector<1x8xf32>
    %157 = vector.broadcast %156 : vector<1x8xf32> to vector<8x8xf32>
    %158 = arith.addf %154, %157 : vector<8x8xf32>
    %cst_122 = arith.constant dense<0.000000e+00> : vector<8x8xf32>
    %159 = tpu.matmul %1, %150, %cst_122 {dimension_numbers = #tpu.dot_dimension_numbers<[1], [0], [0], [1], [0, 0, 1, 1], [], []>} : vector<8x32xbf16>, vector<32x8xbf16>, vector<8x8xf32> -> vector<8x8xf32>
    %c1_123 = arith.constant 1 : index
    %c3_124 = arith.constant 3 : index
    %c0_125 = arith.constant 0 : index
    %c0_126 = arith.constant 0 : index
    %160 = vector.load %arg3[%c1_123, %c3_124, %c0_125, %c0_126] : memref<3x4x1x8xf32, #tpu.memory_space<vmem>>, vector<1x1x1x8xf32>
    %161 = vector.shape_cast %160 : vector<1x1x1x8xf32> to vector<1x8xf32>
    %162 = vector.broadcast %161 : vector<1x8xf32> to vector<8x8xf32>
    %163 = arith.addf %159, %162 : vector<8x8xf32>
    %cst_127 = arith.constant dense<0.000000e+00> : vector<8x8xf32>
    %164 = tpu.matmul %1, %153, %cst_127 {dimension_numbers = #tpu.dot_dimension_numbers<[1], [0], [0], [1], [0, 0, 1, 1], [], []>} : vector<8x32xbf16>, vector<32x8xbf16>, vector<8x8xf32> -> vector<8x8xf32>
    %c2_128 = arith.constant 2 : index
    %c3_129 = arith.constant 3 : index
    %c0_130 = arith.constant 0 : index
    %c0_131 = arith.constant 0 : index
    %165 = vector.load %arg3[%c2_128, %c3_129, %c0_130, %c0_131] : memref<3x4x1x8xf32, #tpu.memory_space<vmem>>, vector<1x1x1x8xf32>
    %166 = vector.shape_cast %165 : vector<1x1x1x8xf32> to vector<1x8xf32>
    %167 = vector.broadcast %166 : vector<1x8xf32> to vector<8x8xf32>
    %168 = arith.addf %164, %167 : vector<8x8xf32>
    %cst_132 = arith.constant 0.353553385 : f32
    %169 = vector.broadcast %cst_132 : f32 to vector<8x8xf32>
    %170 = arith.mulf %158, %169 : vector<8x8xf32>
    %171 = arith.truncf %170 : vector<8x8xf32> to vector<8x8xbf16>
    %172 = arith.truncf %163 : vector<8x8xf32> to vector<8x8xbf16>
    %cst_133 = arith.constant dense<0.000000e+00> : vector<8x8xf32>
    %173 = tpu.matmul %171, %172, %cst_133 {dimension_numbers = #tpu.dot_dimension_numbers<[1], [1], [0], [0], [0, 0, 1, 0], [], []>} : vector<8x8xbf16>, vector<8x8xbf16>, vector<8x8xf32> -> vector<8x8xf32>
    %cst_134 = arith.constant dense<0xFF800000> : vector<8xf32>
    %174 = vector.multi_reduction <maximumf>, %173, %cst_134 [1] : vector<8x8xf32> to vector<8xf32>
    %175 = vector.shape_cast %174 : vector<8xf32> to vector<8x1xf32>
    %176 = vector.broadcast %175 : vector<8x1xf32> to vector<8x8xf32>
    %177 = arith.subf %173, %176 : vector<8x8xf32>
    %178 = math.exp %177 : vector<8x8xf32>
    %cst_135 = arith.constant dense<0.000000e+00> : vector<8xf32>
    %179 = vector.multi_reduction <add>, %178, %cst_135 [1] : vector<8x8xf32> to vector<8xf32>
    %180 = vector.shape_cast %179 : vector<8xf32> to vector<8x1xf32>
    %181 = tpu.reciprocal %180 {approx = true} : vector<8x1xf32> -> vector<8x1xf32>
    %182 = vector.broadcast %181 : vector<8x1xf32> to vector<8x8xf32>
    %183 = arith.mulf %178, %182 : vector<8x8xf32>
    %184 = arith.truncf %183 : vector<8x8xf32> to vector<8x8xbf16>
    %185 = arith.truncf %168 : vector<8x8xf32> to vector<8x8xbf16>
    %cst_136 = arith.constant dense<0.000000e+00> : vector<8x8xf32>
    %186 = tpu.matmul %184, %185, %cst_136 {dimension_numbers = #tpu.dot_dimension_numbers<[1], [0], [0], [1], [0, 0, 1, 1], [], []>} : vector<8x8xbf16>, vector<8x8xbf16>, vector<8x8xf32> -> vector<8x8xf32>
    %187 = arith.truncf %186 : vector<8x8xf32> to vector<8x8xbf16>
    %c3_137 = arith.constant 3 : index
    %c0_138 = arith.constant 0 : index
    %c0_139 = arith.constant 0 : index
    %188 = vector.load %arg4[%c3_137, %c0_138, %c0_139] : memref<4x8x32xf32, #tpu.memory_space<vmem>>, vector<1x8x32xf32>
    %189 = vector.shape_cast %188 : vector<1x8x32xf32> to vector<8x32xf32>
    %190 = arith.truncf %189 : vector<8x32xf32> to vector<8x32xbf16>
    %cst_140 = arith.constant dense<0.000000e+00> : vector<8x32xf32>
    %191 = tpu.matmul %187, %190, %cst_140 {dimension_numbers = #tpu.dot_dimension_numbers<[1], [0], [0], [1], [0, 0, 1, 1], [], []>} : vector<8x8xbf16>, vector<8x32xbf16>, vector<8x32xf32> -> vector<8x32xf32>
    %192 = arith.addf %144, %191 : vector<8x32xf32>
    %c0_141 = arith.constant 0 : index
    %c0_142 = arith.constant 0 : index
    %193 = vector.load %arg5[%c0_141, %c0_142] : memref<1x32xf32, #tpu.memory_space<vmem>>, vector<1x32xf32>
    %194 = vector.broadcast %193 : vector<1x32xf32> to vector<8x32xf32>
    %195 = arith.addf %192, %194 : vector<8x32xf32>
    %c0_143 = arith.constant 0 : index
    %c0_144 = arith.constant 0 : index
    %196 = vector.load %arg6[%c0_143, %c0_144] : memref<8x32xf32, #tpu.memory_space<vmem>>, vector<8x32xf32>
    tpu.vector_store %arg6[%c0_143, %c0_144], %195 {strides = array<i32>} : memref<8x32xf32, #tpu.memory_space<vmem>>, vector<8x32xf32>,
    return
  }
  func.func @transform_0(%arg0: i32) -> (i32, i32) {
    %c0_i32 = arith.constant 0 : i32
    %c0_i32_0 = arith.constant 0 : i32
    %c0_i32_1 = arith.constant 0 : i32
    return %c0_i32, %c0_i32_0 : i32, i32
  }
  func.func @transform_1(%arg0: i32) -> (i32, i32, i32, i32) {
    %c0_i32 = arith.constant 0 : i32
    %c0_i32_0 = arith.constant 0 : i32
    %c0_i32_1 = arith.constant 0 : i32
    %c0_i32_2 = arith.constant 0 : i32
    %c0_i32_3 = arith.constant 0 : i32
    return %c0_i32, %c0_i32_0, %c0_i32_1, %c0_i32_2 : i32, i32, i32, i32
  }
  func.func @transform_2(%arg0: i32) -> (i32, i32, i32, i32) {
    %c0_i32 = arith.constant 0 : i32
    %c0_i32_0 = arith.constant 0 : i32
    %c0_i32_1 = arith.constant 0 : i32
    %c0_i32_2 = arith.constant 0 : i32
    %c0_i32_3 = arith.constant 0 : i32
    return %c0_i32, %c0_i32_0, %c0_i32_1, %c0_i32_2 : i32, i32, i32, i32
  }
  func.func @transform_3(%arg0: i32) -> (i32, i32, i32) {
    %c0_i32 = arith.constant 0 : i32
    %c0_i32_0 = arith.constant 0 : i32
    %c0_i32_1 = arith.constant 0 : i32
    %c0_i32_2 = arith.constant 0 : i32
    return %c0_i32, %c0_i32_0, %c0_i32_1 : i32, i32, i32
  }
  func.func @transform_4(%arg0: i32) -> (i32, i32) {
    %c0_i32 = arith.constant 0 : i32
    %c0_i32_0 = arith.constant 0 : i32
    %c0_i32_1 = arith.constant 0 : i32
    return %c0_i32, %c0_i32_0 : i32, i32
  }
  func.func @transform_5(%arg0: i32) -> (i32, i32) {
    %c0_i32 = arith.constant 0 : i32
    %c0_i32_0 = arith.constant 0 : i32
    %c0_i32_1 = arith.constant 0 : i32
    return %c0_i32, %c0_i32_0 : i32, i32
  }
}

</mosaic_0001>

<llo_original>
// kernel: tpu_custom_call.1
$region0: #{tpu_custom_call.1}
  #allocation0 [shape = 'u32[]', space=smem, size = 0x4, offset = 0x4, fixed_abs, tag = 'smem constant byte address 0x4 - core index']
  #allocation1 [shape = 'u32[144,128]{1,0:T(1,128)}', space=vmem, size = 0x12000, scoped, tag = 'internal scratch']
  %s0 = inlined_call_operand.vmem [shape: f32[8,32], index: 0, kind: input, shape index: {}]
  %s1 = inlined_call_operand.vmem [shape: f32[3,4,32,8], index: 1, kind: input, shape index: {}]
  %s2 = inlined_call_operand.vmem [shape: f32[3,4,1,8], index: 2, kind: input, shape index: {}]
  %s3 = inlined_call_operand.vmem [shape: f32[4,8,32], index: 3, kind: input, shape index: {}]
  %s4 = inlined_call_operand.vmem [shape: f32[1,32], index: 4, kind: input, shape index: {}]
  %s5 = inlined_call_operand.hbm [shape: f32[8,32], index: 5, kind: output, shape index: {}]
  %s6 = sld [smem:[#allocation0]]
  $region30: #{tpu_custom_call.1} parent=0
    _
  %s8 = ssub.s32 1, %s6
  %s9 = scalar_select 0, %s8, %s6
  $region1: #{tpu_custom_call.1} parent=0
    #allocation2 [shape = 'u8[4096]{0}', space=vmem, size = 0x1000, scoped, tag = 'output window, operand 0, single buffered']
    #allocation3 [shape = 's32[1]{0}', space=sflag, size = 0x4, scoped, tag = 'scoped memory for tpu_custom_call.1']
    %10 = vsyncpa [#allocation3], 0
    // Predicated region
    $region2: #{tpu_custom_call.1} parent=1 // pred_check
      _
    $region3: #{tpu_custom_call.1} parent=1 // pred_check_branch
      %12 = sbr.rel (0) target = $region5
    $region4: #{tpu_custom_call.1} parent=1 // pred_region
      _
    $region5: #{tpu_custom_call.1} parent=1 // pred_fallthru
      _
    // Predicated region
    $region6: #{tpu_custom_call.1} parent=1 // pred_check
      _
    $region7: #{tpu_custom_call.1} parent=1 // pred_check_branch
      %14 = sbr.rel (0) target = $region9
    $region8: #{tpu_custom_call.1} parent=1 // pred_region
      _
    $region9: #{tpu_custom_call.1} parent=1 // pred_fallthru
      _
    // Predicated region
    $region10: #{tpu_custom_call.1} parent=1 // pred_check
      _
    $region11: #{tpu_custom_call.1} parent=1 // pred_check_branch
      %16 = sbr.rel (0) target = $region13
    $region12: #{tpu_custom_call.1} parent=1 // pred_region
      _
    $region13: #{tpu_custom_call.1} parent=1 // pred_fallthru
      _
    // Predicated region
    $region14: #{tpu_custom_call.1} parent=1 // pred_check
      _
    $region15: #{tpu_custom_call.1} parent=1 // pred_check_branch
      %18 = sbr.rel (0) target = $region17
    $region16: #{tpu_custom_call.1} parent=1 // pred_region
      _
    $region17: #{tpu_custom_call.1} parent=1 // pred_fallthru
      _
    // Predicated region
    $region18: #{tpu_custom_call.1} parent=1 // pred_check
      _
    $region19: #{tpu_custom_call.1} parent=1 // pred_check_branch
      %20 = sbr.rel (0) target = $region21
    $region20: #{tpu_custom_call.1} parent=1 // pred_region
      _
    $region21: #{tpu_custom_call.1} parent=1 // pred_fallthru
      _
    %v22 = vld [vmem:[%s0] sm:$0xff]
    %v23 = vpack.c.bf16 %v22, %v22
    %v24 = vld [vmem:[%s1] sm:$0xff]
    %v25 = vld [vmem:[%s1 + $0x8] sm:$0xff]
    %v26 = vld [vmem:[%s1 + $0x10] sm:$0xff]
    %v27 = vld [vmem:[%s1 + $0x18] sm:$0xff]
    %v28 = vpack.c.bf16 %v25, %v24
    %v29 = vpack.c.bf16 %v27, %v26
    %s30 = scalar_lea.vmem %s1, 128
    %v31 = vld [vmem:[%s30] sm:$0xff]
    %v32 = vld [vmem:[%s30 + $0x8] sm:$0xff]
    %v33 = vld [vmem:[%s30 + $0x10] sm:$0xff]
    %v34 = vld [vmem:[%s30 + $0x18] sm:$0xff]
    %v35 = vpack.c.bf16 %v32, %v31
    %v36 = vpack.c.bf16 %v34, %v33
    %s37 = scalar_lea.vmem %s1, 256
    %v38 = vld [vmem:[%s37] sm:$0xff]
    %v39 = vld [vmem:[%s37 + $0x8] sm:$0xff]
    %v40 = vld [vmem:[%s37 + $0x10] sm:$0xff]
    %v41 = vld [vmem:[%s37 + $0x18] sm:$0xff]
    %v42 = vpack.c.bf16 %v39, %v38
    %v43 = vpack.c.bf16 %v41, %v40
    %v44 = vld [vmem:[%s2] sm:$0x1]
    %v46 = vlaneseq
    %v47 = vshrl.u32 %v46, 7
    %v48 = vsub.s32 0, %v47
    %v49 = vrot.slane %v44, %v48
    %vm51 = vcmask 261120
    %v53 = vsel %vm51, %v23, 0
    %55 = vmatprep.subr.bf16.mxu0 0
    %56 = vmatpush1.bf16.msra.mxu0 0
    %57 = vmatprep.subr.bf16.mxu0 0
    %58 = vmatpush1.bf16.msra.mxu0 0
    %59 = vmatprep.subr.bf16.mxu0 0
    %60 = vmatpush1.bf16.msra.mxu0 0
    %61 = vmatprep.subr.bf16.mxu0 0
    %62 = vmatpush1.bf16.msra.mxu0 0
    %63 = vmatprep.subr.bf16.mxu0 0
    %64 = vmatpush1.bf16.msra.mxu0 0
    %65 = vmatprep.subr.bf16.mxu0 0
    %66 = vmatpush1.bf16.msra.mxu0 0
    %67 = vmatprep.subr.bf16.mxu0 0
    %68 = vmatpush1.bf16.msra.mxu0 %v29
    %69 = vmatprep.subr.bf16.mxu0 0
    %70 = vmatpush1.bf16.msra.mxu0 %v28
    %71 = vmatprep.subr.bf16.mxu0 0
    %72 = vmatpush2.bf16.msra.mxu0 0
    %73 = vmatprep.subr.bf16.mxu0 0
    %74 = vmatpush2.bf16.msra.mxu0 0
    %75 = vmatprep.subr.bf16.mxu0 0
    %76 = vmatpush2.bf16.msra.mxu0 0
    %77 = vmatprep.subr.bf16.mxu0 0
    %78 = vmatpush2.bf16.msra.mxu0 0
    %79 = vmatprep.subr.bf16.mxu0 0
    %80 = vmatpush2.bf16.msra.mxu0 0
    %81 = vmatprep.subr.bf16.mxu0 0
    %82 = vmatpush2.bf16.msra.mxu0 0
    %83 = vmatprep.subr.bf16.mxu0 0
    %84 = vmatpush2.bf16.msra.mxu0 0
    %85 = vmatprep.subr.bf16.mxu0 0
    %86 = vmatpush2.bf16.msra.mxu0 0
    %87 = vmatprep.mubr.bf16.mxu0 0
    %88 = vmatmul.mubr.bf16.gmra.mxu0 %v53
    %v89 = vpop.f32.mrf.mxu0
    %v90 = vadd.f32 %v49, %v89
    %v91 = vpop.f32.mrf.mxu0
    %v92 = vpop.f32.mrf.mxu0
    %v93 = vpop.f32.mrf.mxu0
    %94 = vdwg.mxu0
    %s95 = scalar_lea.vmem %s2, 4
    %v96 = vld [vmem:[%s95] sm:$0x1]
    %v98 = vlaneseq
    %v99 = vshrl.u32 %v98, 7
    %v100 = vsub.s32 0, %v99
    %v101 = vrot.slane %v96, %v100
    %103 = vmatprep.subr.bf16.mxu0 0
    %104 = vmatpush1.bf16.msra.mxu0 0
    %105 = vmatprep.subr.bf16.mxu0 0
    %106 = vmatpush1.bf16.msra.mxu0 0
    %107 = vmatprep.subr.bf16.mxu0 0
    %108 = vmatpush1.bf16.msra.mxu0 0
    %109 = vmatprep.subr.bf16.mxu0 0
    %110 = vmatpush1.bf16.msra.mxu0 0
    %111 = vmatprep.subr.bf16.mxu0 0
    %112 = vmatpush1.bf16.msra.mxu0 0
    %113 = vmatprep.subr.bf16.mxu0 0
    %114 = vmatpush1.bf16.msra.mxu0 0
    %115 = vmatprep.subr.bf16.mxu0 0
    %116 = vmatpush1.bf16.msra.mxu0 %v36
    %117 = vmatprep.subr.bf16.mxu0 0
    %118 = vmatpush1.bf16.msra.mxu0 %v35
    %119 = vmatprep.subr.bf16.mxu0 0
    %120 = vmatpush2.bf16.msra.mxu0 0
    %121 = vmatprep.subr.bf16.mxu0 0
    %122 = vmatpush2.bf16.msra.mxu0 0
    %123 = vmatprep.subr.bf16.mxu0 0
    %124 = vmatpush2.bf16.msra.mxu0 0
    %125 = vmatprep.subr.bf16.mxu0 0
    %126 = vmatpush2.bf16.msra.mxu0 0
    %127 = vmatprep.subr.bf16.mxu0 0
    %128 = vmatpush2.bf16.msra.mxu0 0
    %129 = vmatprep.subr.bf16.mxu0 0
    %130 = vmatpush2.bf16.msra.mxu0 0
    %131 = vmatprep.subr.bf16.mxu0 0
    %132 = vmatpush2.bf16.msra.mxu0 0
    %133 = vmatprep.subr.bf16.mxu0 0
    %134 = vmatpush2.bf16.msra.mxu0 0
    %135 = vmatprep.mubr.bf16.mxu0 0
    %136 = vmatmul.mubr.bf16.gmra.mxu0 %v53
    %v137 = vpop.f32.mrf.mxu0
    %v138 = vadd.f32 %v101, %v137
    %v139 = vpop.f32.mrf.mxu0
    %v140 = vpop.f32.mrf.mxu0
    %v141 = vpop.f32.mrf.mxu0
    %142 = vdwg.mxu0
    %s143 = scalar_lea.vmem %s2, 8
    %v144 = vld [vmem:[%s143] sm:$0x1]
    %v146 = vlaneseq
    %v147 = vshrl.u32 %v146, 7
    %v148 = vsub.s32 0, %v147
    %v149 = vrot.slane %v144, %v148
    %151 = vmatprep.subr.bf16.mxu0 0
    %152 = vmatpush1.bf16.msra.mxu0 0
    %153 = vmatprep.subr.bf16.mxu0 0
    %154 = vmatpush1.bf16.msra.mxu0 0
    %155 = vmatprep.subr.bf16.mxu0 0
    %156 = vmatpush1.bf16.msra.mxu0 0
    %157 = vmatprep.subr.bf16.mxu0 0
    %158 = vmatpush1.bf16.msra.mxu0 0
    %159 = vmatprep.subr.bf16.mxu0 0
    %160 = vmatpush1.bf16.msra.mxu0 0
    %161 = vmatprep.subr.bf16.mxu0 0
    %162 = vmatpush1.bf16.msra.mxu0 0
    %163 = vmatprep.subr.bf16.mxu0 0
    %164 = vmatpush1.bf16.msra.mxu0 %v43
    %165 = vmatprep.subr.bf16.mxu0 0
    %166 = vmatpush1.bf16.msra.mxu0 %v42
    %167 = vmatprep.subr.bf16.mxu0 0
    %168 = vmatpush2.bf16.msra.mxu0 0
    %169 = vmatprep.subr.bf16.mxu0 0
    %170 = vmatpush2.bf16.msra.mxu0 0
    %171 = vmatprep.subr.bf16.mxu0 0
    %172 = vmatpush2.bf16.msra.mxu0 0
    %173 = vmatprep.subr.bf16.mxu0 0
    %174 = vmatpush2.bf16.msra.mxu0 0
    %175 = vmatprep.subr.bf16.mxu0 0
    %176 = vmatpush2.bf16.msra.mxu0 0
    %177 = vmatprep.subr.bf16.mxu0 0
    %178 = vmatpush2.bf16.msra.mxu0 0
    %179 = vmatprep.subr.bf16.mxu0 0
    %180 = vmatpush2.bf16.msra.mxu0 0
    %181 = vmatprep.subr.bf16.mxu0 0
    %182 = vmatpush2.bf16.msra.mxu0 0
    %183 = vmatprep.mubr.bf16.mxu0 0
    %184 = vmatmul.mubr.bf16.gmra.mxu0 %v53
    %v185 = vpop.f32.mrf.mxu0
    %v186 = vadd.f32 %v149, %v185
    %v187 = vpop.f32.mrf.mxu0
    %v188 = vpop.f32.mrf.mxu0
    %v189 = vpop.f32.mrf.mxu0
    %190 = vdwg.mxu0
    %v191 = vmul.f32 %v90, 0.35355338
    %v192 = vpack.c.bf16 %v191, %v191
    %v193 = vpack.c.bf16 %v138, %v138
    %vm194 = vcmask 64512
    %v196 = vsel %vm194, %v192, 0
    %v199 = vsel %vm194, %v193, 0
    %201 = vmatprep.subr.bf16.mxu0 0
    %202 = vmatpush1.bf16.xpose.msra.mxu0 0
    %203 = vmatprep.subr.bf16.mxu0 0
    %204 = vmatpush1.bf16.xpose.msra.mxu0 0
    %205 = vmatprep.subr.bf16.mxu0 0
    %206 = vmatpush1.bf16.xpose.msra.mxu0 0
    %207 = vmatprep.subr.bf16.mxu0 0
    %208 = vmatpush1.bf16.xpose.msra.mxu0 0
    %209 = vmatprep.subr.bf16.mxu0 0
    %210 = vmatpush1.bf16.xpose.msra.mxu0 0
    %211 = vmatprep.subr.bf16.mxu0 0
    %212 = vmatpush1.bf16.xpose.msra.mxu0 0
    %213 = vmatprep.subr.bf16.mxu0 0
    %214 = vmatpush1.bf16.xpose.msra.mxu0 0
    %215 = vmatprep.subr.bf16.mxu0 0
    %216 = vmatpush1.bf16.xpose.msra.mxu0 %v199
    %217 = vmatprep.subr.bf16.mxu0 0
    %218 = vmatpush2.bf16.xpose.msra.mxu0 0
    %219 = vmatprep.subr.bf16.mxu0 0
    %220 = vmatpush2.bf16.xpose.msra.mxu0 0
    %221 = vmatprep.subr.bf16.mxu0 0
    %222 = vmatpush2.bf16.xpose.msra.mxu0 0
    %223 = vmatprep.subr.bf16.mxu0 0
    %224 = vmatpush2.bf16.xpose.msra.mxu0 0
    %225 = vmatprep.subr.bf16.mxu0 0
    %226 = vmatpush2.bf16.xpose.msra.mxu0 0
    %227 = vmatprep.subr.bf16.mxu0 0
    %228 = vmatpush2.bf16.xpose.msra.mxu0 0
    %229 = vmatprep.subr.bf16.mxu0 0
    %230 = vmatpush2.bf16.xpose.msra.mxu0 0
    %231 = vmatprep.subr.bf16.mxu0 0
    %232 = vmatpush2.bf16.xpose.msra.mxu0 0
    %233 = vmatprep.mubr.bf16.mxu0 0
    %234 = vmatmul.mubr.bf16.gmra.mxu0 %v196
    %v235 = vpop.f32.mrf.mxu0
    %v236 = vadd.f32 0.0, %v235
    %v237 = vpop.f32.mrf.mxu0
    %v238 = vpop.f32.mrf.mxu0
    %v239 = vpop.f32.mrf.mxu0
    %240 = vdwg.mxu0
    %v241 = vsel %vm194, %v236, -inf
    %242 = vmax.xlane.f32.xlu0 %v241
    %v243 = vpop.xlane.xlu0 %242
    %v244 = vsub.f32 %v236, %v243
    %v245 = vmul.f32 %v244, 1.442695
    %v246 = vpow.pop %v245
    %v247 = vsel %vm194, %v246, 0.0
    %248 = vadd.xlane.f32.xlu0 %v247
    %v249 = vpop.xlane.xlu0 %248
    %v250 = vrcp.pop %v249
    %v251 = vmul.f32 %v246, %v250
    %v252 = vpack.c.bf16 %v251, %v251
    %v253 = vpack.c.bf16 %v186, %v186
    %v255 = vsel %vm194, %v252, 0
    %vm257 = vcmask 1043456
    %v259 = vsel %vm257, %v253, 0
    %261 = vmatprep.subr.bf16.mxu0 0
    %262 = vmatpush1.bf16.msra.mxu0 0
    %263 = vmatprep.subr.bf16.mxu0 0
    %264 = vmatpush1.bf16.msra.mxu0 0
    %265 = vmatprep.subr.bf16.mxu0 0
    %266 = vmatpush1.bf16.msra.mxu0 0
    %267 = vmatprep.subr.bf16.mxu0 0
    %268 = vmatpush1.bf16.msra.mxu0 0
    %269 = vmatprep.subr.bf16.mxu0 0
    %270 = vmatpush1.bf16.msra.mxu0 0
    %271 = vmatprep.subr.bf16.mxu0 0
    %272 = vmatpush1.bf16.msra.mxu0 0
    %273 = vmatprep.subr.bf16.mxu0 0
    %274 = vmatpush1.bf16.msra.mxu0 0
    %275 = vmatprep.subr.bf16.mxu0 0
    %276 = vmatpush1.bf16.msra.mxu0 %v259
    %277 = vmatprep.subr.bf16.mxu0 0
    %278 = vmatpush2.bf16.msra.mxu0 0
    %279 = vmatprep.subr.bf16.mxu0 0
    %280 = vmatpush2.bf16.msra.mxu0 0
    %281 = vmatprep.subr.bf16.mxu0 0
    %282 = vmatpush2.bf16.msra.mxu0 0
    %283 = vmatprep.subr.bf16.mxu0 0
    %284 = vmatpush2.bf16.msra.mxu0 0
    %285 = vmatprep.subr.bf16.mxu0 0
    %286 = vmatpush2.bf16.msra.mxu0 0
    %287 = vmatprep.subr.bf16.mxu0 0
    %288 = vmatpush2.bf16.msra.mxu0 0
    %289 = vmatprep.subr.bf16.mxu0 0
    %290 = vmatpush2.bf16.msra.mxu0 0
    %291 = vmatprep.subr.bf16.mxu0 0
    %292 = vmatpush2.bf16.msra.mxu0 0
    %293 = vmatprep.mubr.bf16.mxu0 0
    %294 = vmatmul.mubr.bf16.gmra.mxu0 %v255
    %v295 = vpop.f32.mrf.mxu0
    %v296 = vadd.f32 0.0, %v295
    %v297 = vpop.f32.mrf.mxu0
    %v298 = vpop.f32.mrf.mxu0
    %v299 = vpop.f32.mrf.mxu0
    %300 = vdwg.mxu0
    %v301 = vpack.c.bf16 %v296, %v296
    %v302 = vld [vmem:[%s3] sm:$0xff]
    %v303 = vpack.c.bf16 %v302, %v302
    %s304 = scalar_lea.vmem %s1, 32
    %v305 = vld [vmem:[%s304] sm:$0xff]
    %v306 = vld [vmem:[%s304 + $0x8] sm:$0xff]
    %v307 = vld [vmem:[%s304 + $0x10] sm:$0xff]
    %v308 = vld [vmem:[%s304 + $0x18] sm:$0xff]
    %v309 = vpack.c.bf16 %v306, %v305
    %v310 = vpack.c.bf16 %v308, %v307
    %s311 = scalar_lea.vmem %s1, 160
    %v312 = vld [vmem:[%s311] sm:$0xff]
    %v313 = vld [vmem:[%s311 + $0x8] sm:$0xff]
    %v314 = vld [vmem:[%s311 + $0x10] sm:$0xff]
    %v315 = vld [vmem:[%s311 + $0x18] sm:$0xff]
    %v316 = vpack.c.bf16 %v313, %v312
    %v317 = vpack.c.bf16 %v315, %v314
    %s318 = scalar_lea.vmem %s1, 288
    %v319 = vld [vmem:[%s318] sm:$0xff]
    %v320 = vld [vmem:[%s318 + $0x8] sm:$0xff]
    %v321 = vld [vmem:[%s318 + $0x10] sm:$0xff]
    %v322 = vld [vmem:[%s318 + $0x18] sm:$0xff]
    %v323 = vpack.c.bf16 %v320, %v319
    %v324 = vpack.c.bf16 %v322, %v321
    %s325 = scalar_lea.vmem %s2, 1
    %v326 = vld [vmem:[%s325] sm:$0x1]
    %v328 = vlaneseq
    %v329 = vshrl.u32 %v328, 7
    %v330 = vsub.s32 0, %v329
    %v331 = vrot.slane %v326, %v330
    %333 = vmatprep.subr.bf16.mxu0 0
    %334 = vmatpush1.bf16.msra.mxu0 0
    %335 = vmatprep.subr.bf16.mxu0 0
    %336 = vmatpush1.bf16.msra.mxu0 0
    %337 = vmatprep.subr.bf16.mxu0 0
    %338 = vmatpush1.bf16.msra.mxu0 0
    %339 = vmatprep.subr.bf16.mxu0 0
    %340 = vmatpush1.bf16.msra.mxu0 0
    %341 = vmatprep.subr.bf16.mxu0 0
    %342 = vmatpush1.bf16.msra.mxu0 0
    %343 = vmatprep.subr.bf16.mxu0 0
    %344 = vmatpush1.bf16.msra.mxu0 0
    %345 = vmatprep.subr.bf16.mxu0 0
    %346 = vmatpush1.bf16.msra.mxu0 %v310
    %347 = vmatprep.subr.bf16.mxu0 0
    %348 = vmatpush1.bf16.msra.mxu0 %v309
    %349 = vmatprep.subr.bf16.mxu0 0
    %350 = vmatpush2.bf16.msra.mxu0 0
    %351 = vmatprep.subr.bf16.mxu0 0
    %352 = vmatpush2.bf16.msra.mxu0 0
    %353 = vmatprep.subr.bf16.mxu0 0
    %354 = vmatpush2.bf16.msra.mxu0 0
    %355 = vmatprep.subr.bf16.mxu0 0
    %356 = vmatpush2.bf16.msra.mxu0 0
    %357 = vmatprep.subr.bf16.mxu0 0
    %358 = vmatpush2.bf16.msra.mxu0 0
    %359 = vmatprep.subr.bf16.mxu0 0
    %360 = vmatpush2.bf16.msra.mxu0 0
    %361 = vmatprep.subr.bf16.mxu0 0
    %362 = vmatpush2.bf16.msra.mxu0 0
    %363 = vmatprep.subr.bf16.mxu0 0
    %364 = vmatpush2.bf16.msra.mxu0 0
    %365 = vmatprep.mubr.bf16.mxu0 0
    %366 = vmatmul.mubr.bf16.gmra.mxu0 %v53
    %v367 = vpop.f32.mrf.mxu0
    %v368 = vadd.f32 %v331, %v367
    %v369 = vpop.f32.mrf.mxu0
    %v370 = vpop.f32.mrf.mxu0
    %v371 = vpop.f32.mrf.mxu0
    %372 = vdwg.mxu0
    %s373 = scalar_lea.vmem %s2, 5
    %v374 = vld [vmem:[%s373] sm:$0x1]
    %v376 = vlaneseq
    %v377 = vshrl.u32 %v376, 7
    %v378 = vsub.s32 0, %v377
    %v379 = vrot.slane %v374, %v378
    %381 = vmatprep.subr.bf16.mxu0 0
    %382 = vmatpush1.bf16.msra.mxu0 0
    %383 = vmatprep.subr.bf16.mxu0 0
    %384 = vmatpush1.bf16.msra.mxu0 0
    %385 = vmatprep.subr.bf16.mxu0 0
    %386 = vmatpush1.bf16.msra.mxu0 0
    %387 = vmatprep.subr.bf16.mxu0 0
    %388 = vmatpush1.bf16.msra.mxu0 0
    %389 = vmatprep.subr.bf16.mxu0 0
    %390 = vmatpush1.bf16.msra.mxu0 0
    %391 = vmatprep.subr.bf16.mxu0 0
    %392 = vmatpush1.bf16.msra.mxu0 0
    %393 = vmatprep.subr.bf16.mxu0 0
    %394 = vmatpush1.bf16.msra.mxu0 %v317
    %395 = vmatprep.subr.bf16.mxu0 0
    %396 = vmatpush1.bf16.msra.mxu0 %v316
    %397 = vmatprep.subr.bf16.mxu0 0
    %398 = vmatpush2.bf16.msra.mxu0 0
    %399 = vmatprep.subr.bf16.mxu0 0
    %400 = vmatpush2.bf16.msra.mxu0 0
    %401 = vmatprep.subr.bf16.mxu0 0
    %402 = vmatpush2.bf16.msra.mxu0 0
    %403 = vmatprep.subr.bf16.mxu0 0
    %404 = vmatpush2.bf16.msra.mxu0 0
    %405 = vmatprep.subr.bf16.mxu0 0
    %406 = vmatpush2.bf16.msra.mxu0 0
    %407 = vmatprep.subr.bf16.mxu0 0
    %408 = vmatpush2.bf16.msra.mxu0 0
    %409 = vmatprep.subr.bf16.mxu0 0
    %410 = vmatpush2.bf16.msra.mxu0 0
    %411 = vmatprep.subr.bf16.mxu0 0
    %412 = vmatpush2.bf16.msra.mxu0 0
    %413 = vmatprep.mubr.bf16.mxu0 0
    %414 = vmatmul.mubr.bf16.gmra.mxu0 %v53
    %v415 = vpop.f32.mrf.mxu0
    %v416 = vadd.f32 %v379, %v415
    %v417 = vpop.f32.mrf.mxu0
    %v418 = vpop.f32.mrf.mxu0
    %v419 = vpop.f32.mrf.mxu0
    %420 = vdwg.mxu0
    %s421 = scalar_lea.vmem %s2, 9
    %v422 = vld [vmem:[%s421] sm:$0x1]
    %v424 = vlaneseq
    %v425 = vshrl.u32 %v424, 7
    %v426 = vsub.s32 0, %v425
    %v427 = vrot.slane %v422, %v426
    %429 = vmatprep.subr.bf16.mxu0 0
    %430 = vmatpush1.bf16.msra.mxu0 0
    %431 = vmatprep.subr.bf16.mxu0 0
    %432 = vmatpush1.bf16.msra.mxu0 0
    %433 = vmatprep.subr.bf16.mxu0 0
    %434 = vmatpush1.bf16.msra.mxu0 0
    %435 = vmatprep.subr.bf16.mxu0 0
    %436 = vmatpush1.bf16.msra.mxu0 0
    %437 = vmatprep.subr.bf16.mxu0 0
    %438 = vmatpush1.bf16.msra.mxu0 0
    %439 = vmatprep.subr.bf16.mxu0 0
    %440 = vmatpush1.bf16.msra.mxu0 0
    %441 = vmatprep.subr.bf16.mxu0 0
    %442 = vmatpush1.bf16.msra.mxu0 %v324
    %443 = vmatprep.subr.bf16.mxu0 0
    %444 = vmatpush1.bf16.msra.mxu0 %v323
    %445 = vmatprep.subr.bf16.mxu0 0
    %446 = vmatpush2.bf16.msra.mxu0 0
    %447 = vmatprep.subr.bf16.mxu0 0
    %448 = vmatpush2.bf16.msra.mxu0 0
    %449 = vmatprep.subr.bf16.mxu0 0
    %450 = vmatpush2.bf16.msra.mxu0 0
    %451 = vmatprep.subr.bf16.mxu0 0
    %452 = vmatpush2.bf16.msra.mxu0 0
    %453 = vmatprep.subr.bf16.mxu0 0
    %454 = vmatpush2.bf16.msra.mxu0 0
    %455 = vmatprep.subr.bf16.mxu0 0
    %456 = vmatpush2.bf16.msra.mxu0 0
    %457 = vmatprep.subr.bf16.mxu0 0
    %458 = vmatpush2.bf16.msra.mxu0 0
    %459 = vmatprep.subr.bf16.mxu0 0
    %460 = vmatpush2.bf16.msra.mxu0 0
    %461 = vmatprep.mubr.bf16.mxu0 0
    %462 = vmatmul.mubr.bf16.gmra.mxu0 %v53
    %v463 = vpop.f32.mrf.mxu0
    %v464 = vadd.f32 %v427, %v463
    %v465 = vpop.f32.mrf.mxu0
    %v466 = vpop.f32.mrf.mxu0
    %v467 = vpop.f32.mrf.mxu0
    %468 = vdwg.mxu0
    %v469 = vmul.f32 %v368, 0.35355338
    %v470 = vpack.c.bf16 %v469, %v469
    %v471 = vpack.c.bf16 %v416, %v416
    %v473 = vsel %vm194, %v470, 0
    %v476 = vsel %vm194, %v471, 0
    %478 = vmatprep.subr.bf16.mxu0 0
    %479 = vmatpush1.bf16.xpose.msra.mxu0 0
    %480 = vmatprep.subr.bf16.mxu0 0
    %481 = vmatpush1.bf16.xpose.msra.mxu0 0
    %482 = vmatprep.subr.bf16.mxu0 0
    %483 = vmatpush1.bf16.xpose.msra.mxu0 0
    %484 = vmatprep.subr.bf16.mxu0 0
    %485 = vmatpush1.bf16.xpose.msra.mxu0 0
    %486 = vmatprep.subr.bf16.mxu0 0
    %487 = vmatpush1.bf16.xpose.msra.mxu0 0
    %488 = vmatprep.subr.bf16.mxu0 0
    %489 = vmatpush1.bf16.xpose.msra.mxu0 0
    %490 = vmatprep.subr.bf16.mxu0 0
    %491 = vmatpush1.bf16.xpose.msra.mxu0 0
    %492 = vmatprep.subr.bf16.mxu0 0
    %493 = vmatpush1.bf16.xpose.msra.mxu0 %v476
    %494 = vmatprep.subr.bf16.mxu0 0
    %495 = vmatpush2.bf16.xpose.msra.mxu0 0
    %496 = vmatprep.subr.bf16.mxu0 0
    %497 = vmatpush2.bf16.xpose.msra.mxu0 0
    %498 = vmatprep.subr.bf16.mxu0 0
    %499 = vmatpush2.bf16.xpose.msra.mxu0 0
    %500 = vmatprep.subr.bf16.mxu0 0
    %501 = vmatpush2.bf16.xpose.msra.mxu0 0
    %502 = vmatprep.subr.bf16.mxu0 0
    %503 = vmatpush2.bf16.xpose.msra.mxu0 0
    %504 = vmatprep.subr.bf16.mxu0 0
    %505 = vmatpush2.bf16.xpose.msra.mxu0 0
    %506 = vmatprep.subr.bf16.mxu0 0
    %507 = vmatpush2.bf16.xpose.msra.mxu0 0
    %508 = vmatprep.subr.bf16.mxu0 0
    %509 = vmatpush2.bf16.xpose.msra.mxu0 0
    %510 = vmatprep.mubr.bf16.mxu0 0
    %511 = vmatmul.mubr.bf16.gmra.mxu0 %v473
    %v512 = vpop.f32.mrf.mxu0
    %v513 = vadd.f32 0.0, %v512
    %v514 = vpop.f32.mrf.mxu0
    %v515 = vpop.f32.mrf.mxu0
    %v516 = vpop.f32.mrf.mxu0
    %517 = vdwg.mxu0
    %v518 = vsel %vm194, %v513, -inf
    %519 = vmax.xlane.f32.xlu0 %v518
    %v520 = vpop.xlane.xlu0 %519
    %v521 = vsub.f32 %v513, %v520
    %v522 = vmul.f32 %v521, 1.442695
    %v523 = vpow.pop %v522
    %v524 = vsel %vm194, %v523, 0.0
    %525 = vadd.xlane.f32.xlu0 %v524
    %v526 = vpop.xlane.xlu0 %525
    %v527 = vrcp.pop %v526
    %v528 = vmul.f32 %v523, %v527
    %v529 = vpack.c.bf16 %v528, %v528
    %v530 = vpack.c.bf16 %v464, %v464
    %v532 = vsel %vm194, %v529, 0
    %v535 = vsel %vm257, %v530, 0
    %537 = vmatprep.subr.bf16.mxu0 0
    %538 = vmatpush1.bf16.msra.mxu0 0
    %539 = vmatprep.subr.bf16.mxu0 0
    %540 = vmatpush1.bf16.msra.mxu0 0
    %541 = vmatprep.subr.bf16.mxu0 0
    %542 = vmatpush1.bf16.msra.mxu0 0
    %543 = vmatprep.subr.bf16.mxu0 0
    %544 = vmatpush1.bf16.msra.mxu0 0
    %545 = vmatprep.subr.bf16.mxu0 0
    %546 = vmatpush1.bf16.msra.mxu0 0
    %547 = vmatprep.subr.bf16.mxu0 0
    %548 = vmatpush1.bf16.msra.mxu0 0
    %549 = vmatprep.subr.bf16.mxu0 0
    %550 = vmatpush1.bf16.msra.mxu0 0
    %551 = vmatprep.subr.bf16.mxu0 0
    %552 = vmatpush1.bf16.msra.mxu0 %v535
    %553 = vmatprep.subr.bf16.mxu0 0
    %554 = vmatpush2.bf16.msra.mxu0 0
    %555 = vmatprep.subr.bf16.mxu0 0
    %556 = vmatpush2.bf16.msra.mxu0 0
    %557 = vmatprep.subr.bf16.mxu0 0
    %558 = vmatpush2.bf16.msra.mxu0 0
    %559 = vmatprep.subr.bf16.mxu0 0
    %560 = vmatpush2.bf16.msra.mxu0 0
    %561 = vmatprep.subr.bf16.mxu0 0
    %562 = vmatpush2.bf16.msra.mxu0 0
    %563 = vmatprep.subr.bf16.mxu0 0
    %564 = vmatpush2.bf16.msra.mxu0 0
    %565 = vmatprep.subr.bf16.mxu0 0
    %566 = vmatpush2.bf16.msra.mxu0 0
    %567 = vmatprep.subr.bf16.mxu0 0
    %568 = vmatpush2.bf16.msra.mxu0 0
    %569 = vmatprep.mubr.bf16.mxu0 0
    %570 = vmatmul.mubr.bf16.gmra.mxu0 %v532
    %v571 = vpop.f32.mrf.mxu0
    %v572 = vadd.f32 0.0, %v571
    %v573 = vpop.f32.mrf.mxu0
    %v574 = vpop.f32.mrf.mxu0
    %v575 = vpop.f32.mrf.mxu0
    %576 = vdwg.mxu0
    %v577 = vpack.c.bf16 %v572, %v572
    %s578 = scalar_lea.vmem %s3, 8
    %v579 = vld [vmem:[%s578] sm:$0xff]
    %v580 = vpack.c.bf16 %v579, %v579
    %v582 = vsel %vm194, %v577, 0
    %v585 = vsel %vm257, %v580, 0
    %587 = vmatprep.subr.bf16.mxu0 0
    %588 = vmatpush1.bf16.msra.mxu0 0
    %589 = vmatprep.subr.bf16.mxu0 0
    %590 = vmatpush1.bf16.msra.mxu0 0
    %591 = vmatprep.subr.bf16.mxu0 0
    %592 = vmatpush1.bf16.msra.mxu0 0
    %593 = vmatprep.subr.bf16.mxu0 0
    %594 = vmatpush1.bf16.msra.mxu0 0
    %595 = vmatprep.subr.bf16.mxu0 0
    %596 = vmatpush1.bf16.msra.mxu0 0
    %597 = vmatprep.subr.bf16.mxu0 0
    %598 = vmatpush1.bf16.msra.mxu0 0
    %599 = vmatprep.subr.bf16.mxu0 0
    %600 = vmatpush1.bf16.msra.mxu0 0
    %601 = vmatprep.subr.bf16.mxu0 0
    %602 = vmatpush1.bf16.msra.mxu0 %v585
    %603 = vmatprep.subr.bf16.mxu0 0
    %604 = vmatpush2.bf16.msra.mxu0 0
    %605 = vmatprep.subr.bf16.mxu0 0
    %606 = vmatpush2.bf16.msra.mxu0 0
    %607 = vmatprep.subr.bf16.mxu0 0
    %608 = vmatpush2.bf16.msra.mxu0 0
    %609 = vmatprep.subr.bf16.mxu0 0
    %610 = vmatpush2.bf16.msra.mxu0 0
    %611 = vmatprep.subr.bf16.mxu0 0
    %612 = vmatpush2.bf16.msra.mxu0 0
    %613 = vmatprep.subr.bf16.mxu0 0
    %614 = vmatpush2.bf16.msra.mxu0 0
    %615 = vmatprep.subr.bf16.mxu0 0
    %616 = vmatpush2.bf16.msra.mxu0 0
    %617 = vmatprep.subr.bf16.mxu0 0
    %618 = vmatpush2.bf16.msra.mxu0 0
    %619 = vmatprep.mubr.bf16.mxu0 0
    %620 = vmatmul.mubr.bf16.gmra.mxu0 %v582
    %v621 = vpop.f32.mrf.mxu0
    %v622 = vadd.f32 0.0, %v621
    %v623 = vpop.f32.mrf.mxu0
    %v624 = vpop.f32.mrf.mxu0
    %v625 = vpop.f32.mrf.mxu0
    %626 = vdwg.mxu0
    %v628 = vsel %vm194, %v301, 0
    %v631 = vsel %vm257, %v303, 0
    %633 = vmatprep.subr.bf16.mxu0 0
    %634 = vmatpush1.bf16.msra.mxu0 0
    %635 = vmatprep.subr.bf16.mxu0 0
    %636 = vmatpush1.bf16.msra.mxu0 0
    %637 = vmatprep.subr.bf16.mxu0 0
    %638 = vmatpush1.bf16.msra.mxu0 0
    %639 = vmatprep.subr.bf16.mxu0 0
    %640 = vmatpush1.bf16.msra.mxu0 0
    %641 = vmatprep.subr.bf16.mxu0 0
    %642 = vmatpush1.bf16.msra.mxu0 0
    %643 = vmatprep.subr.bf16.mxu0 0
    %644 = vmatpush1.bf16.msra.mxu0 0
    %645 = vmatprep.subr.bf16.mxu0 0
    %646 = vmatpush1.bf16.msra.mxu0 0
    %647 = vmatprep.subr.bf16.mxu0 0
    %648 = vmatpush1.bf16.msra.mxu0 %v631
    %649 = vmatprep.subr.bf16.mxu0 0
    %650 = vmatpush2.bf16.msra.mxu0 0
    %651 = vmatprep.subr.bf16.mxu0 0
    %652 = vmatpush2.bf16.msra.mxu0 0
    %653 = vmatprep.subr.bf16.mxu0 0
    %654 = vmatpush2.bf16.msra.mxu0 0
    %655 = vmatprep.subr.bf16.mxu0 0
    %656 = vmatpush2.bf16.msra.mxu0 0
    %657 = vmatprep.subr.bf16.mxu0 0
    %658 = vmatpush2.bf16.msra.mxu0 0
    %659 = vmatprep.subr.bf16.mxu0 0
    %660 = vmatpush2.bf16.msra.mxu0 0
    %661 = vmatprep.subr.bf16.mxu0 0
    %662 = vmatpush2.bf16.msra.mxu0 0
    %663 = vmatprep.subr.bf16.mxu0 0
    %664 = vmatpush2.bf16.msra.mxu0 0
    %665 = vmatprep.mubr.bf16.mxu0 0
    %666 = vmatmul.mubr.bf16.gmra.mxu0 %v628
    %v667 = vpop.f32.mrf.mxu0
    %v668 = vadd.f32 %v622, %v667
    %v669 = vpop.f32.mrf.mxu0
    %v670 = vpop.f32.mrf.mxu0
    %v671 = vpop.f32.mrf.mxu0
    %672 = vdwg.mxu0
    %s673 = scalar_lea.vmem %s1, 64
    %v674 = vld [vmem:[%s673] sm:$0xff]
    %v675 = vld [vmem:[%s673 + $0x8] sm:$0xff]
    %v676 = vld [vmem:[%s673 + $0x10] sm:$0xff]
    %v677 = vld [vmem:[%s673 + $0x18] sm:$0xff]
    %v678 = vpack.c.bf16 %v675, %v674
    %v679 = vpack.c.bf16 %v677, %v676
    %s680 = scalar_lea.vmem %s1, 192
    %v681 = vld [vmem:[%s680] sm:$0xff]
    %v682 = vld [vmem:[%s680 + $0x8] sm:$0xff]
    %v683 = vld [vmem:[%s680 + $0x10] sm:$0xff]
    %v684 = vld [vmem:[%s680 + $0x18] sm:$0xff]
    %v685 = vpack.c.bf16 %v682, %v681
    %v686 = vpack.c.bf16 %v684, %v683
    %s687 = scalar_lea.vmem %s1, 320
    %v688 = vld [vmem:[%s687] sm:$0xff]
    %v689 = vld [vmem:[%s687 + $0x8] sm:$0xff]
    %v690 = vld [vmem:[%s687 + $0x10] sm:$0xff]
    %v691 = vld [vmem:[%s687 + $0x18] sm:$0xff]
    %v692 = vpack.c.bf16 %v689, %v688
    %v693 = vpack.c.bf16 %v691, %v690
    %s694 = scalar_lea.vmem %s2, 2
    %v695 = vld [vmem:[%s694] sm:$0x1]
    %v697 = vlaneseq
    %v698 = vshrl.u32 %v697, 7
    %v699 = vsub.s32 0, %v698
    %v700 = vrot.slane %v695, %v699
    %702 = vmatprep.subr.bf16.mxu0 0
    %703 = vmatpush1.bf16.msra.mxu0 0
    %704 = vmatprep.subr.bf16.mxu0 0
    %705 = vmatpush1.bf16.msra.mxu0 0
    %706 = vmatprep.subr.bf16.mxu0 0
    %707 = vmatpush1.bf16.msra.mxu0 0
    %708 = vmatprep.subr.bf16.mxu0 0
    %709 = vmatpush1.bf16.msra.mxu0 0
    %710 = vmatprep.subr.bf16.mxu0 0
    %711 = vmatpush1.bf16.msra.mxu0 0
    %712 = vmatprep.subr.bf16.mxu0 0
    %713 = vmatpush1.bf16.msra.mxu0 0
    %714 = vmatprep.subr.bf16.mxu0 0
    %715 = vmatpush1.bf16.msra.mxu0 %v679
    %716 = vmatprep.subr.bf16.mxu0 0
    %717 = vmatpush1.bf16.msra.mxu0 %v678
    %718 = vmatprep.subr.bf16.mxu0 0
    %719 = vmatpush2.bf16.msra.mxu0 0
    %720 = vmatprep.subr.bf16.mxu0 0
    %721 = vmatpush2.bf16.msra.mxu0 0
    %722 = vmatprep.subr.bf16.mxu0 0
    %723 = vmatpush2.bf16.msra.mxu0 0
    %724 = vmatprep.subr.bf16.mxu0 0
    %725 = vmatpush2.bf16.msra.mxu0 0
    %726 = vmatprep.subr.bf16.mxu0 0
    %727 = vmatpush2.bf16.msra.mxu0 0
    %728 = vmatprep.subr.bf16.mxu0 0
    %729 = vmatpush2.bf16.msra.mxu0 0
    %730 = vmatprep.subr.bf16.mxu0 0
    %731 = vmatpush2.bf16.msra.mxu0 0
    %732 = vmatprep.subr.bf16.mxu0 0
    %733 = vmatpush2.bf16.msra.mxu0 0
    %734 = vmatprep.mubr.bf16.mxu0 0
    %735 = vmatmul.mubr.bf16.gmra.mxu0 %v53
    %v736 = vpop.f32.mrf.mxu0
    %v737 = vadd.f32 %v700, %v736
    %v738 = vpop.f32.mrf.mxu0
    %v739 = vpop.f32.mrf.mxu0
    %v740 = vpop.f32.mrf.mxu0
    %741 = vdwg.mxu0
    %s742 = scalar_lea.vmem %s2, 6
    %v743 = vld [vmem:[%s742] sm:$0x1]
    %v745 = vlaneseq
    %v746 = vshrl.u32 %v745, 7
    %v747 = vsub.s32 0, %v746
    %v748 = vrot.slane %v743, %v747
    %750 = vmatprep.subr.bf16.mxu0 0
    %751 = vmatpush1.bf16.msra.mxu0 0
    %752 = vmatprep.subr.bf16.mxu0 0
    %753 = vmatpush1.bf16.msra.mxu0 0
    %754 = vmatprep.subr.bf16.mxu0 0
    %755 = vmatpush1.bf16.msra.mxu0 0
    %756 = vmatprep.subr.bf16.mxu0 0
    %757 = vmatpush1.bf16.msra.mxu0 0
    %758 = vmatprep.subr.bf16.mxu0 0
    %759 = vmatpush1.bf16.msra.mxu0 0
    %760 = vmatprep.subr.bf16.mxu0 0
    %761 = vmatpush1.bf16.msra.mxu0 0
    %762 = vmatprep.subr.bf16.mxu0 0
    %763 = vmatpush1.bf16.msra.mxu0 %v686
    %764 = vmatprep.subr.bf16.mxu0 0
    %765 = vmatpush1.bf16.msra.mxu0 %v685
    %766 = vmatprep.subr.bf16.mxu0 0
    %767 = vmatpush2.bf16.msra.mxu0 0
    %768 = vmatprep.subr.bf16.mxu0 0
    %769 = vmatpush2.bf16.msra.mxu0 0
    %770 = vmatprep.subr.bf16.mxu0 0
    %771 = vmatpush2.bf16.msra.mxu0 0
    %772 = vmatprep.subr.bf16.mxu0 0
    %773 = vmatpush2.bf16.msra.mxu0 0
    %774 = vmatprep.subr.bf16.mxu0 0
    %775 = vmatpush2.bf16.msra.mxu0 0
    %776 = vmatprep.subr.bf16.mxu0 0
    %777 = vmatpush2.bf16.msra.mxu0 0
    %778 = vmatprep.subr.bf16.mxu0 0
    %779 = vmatpush2.bf16.msra.mxu0 0
    %780 = vmatprep.subr.bf16.mxu0 0
    %781 = vmatpush2.bf16.msra.mxu0 0
    %782 = vmatprep.mubr.bf16.mxu0 0
    %783 = vmatmul.mubr.bf16.gmra.mxu0 %v53
    %v784 = vpop.f32.mrf.mxu0
    %v785 = vadd.f32 %v748, %v784
    %v786 = vpop.f32.mrf.mxu0
    %v787 = vpop.f32.mrf.mxu0
    %v788 = vpop.f32.mrf.mxu0
    %789 = vdwg.mxu0
    %s790 = scalar_lea.vmem %s2, 10
    %v791 = vld [vmem:[%s790] sm:$0x1]
    %v793 = vlaneseq
    %v794 = vshrl.u32 %v793, 7
    %v795 = vsub.s32 0, %v794
    %v796 = vrot.slane %v791, %v795
    %798 = vmatprep.subr.bf16.mxu0 0
    %799 = vmatpush1.bf16.msra.mxu0 0
    %800 = vmatprep.subr.bf16.mxu0 0
    %801 = vmatpush1.bf16.msra.mxu0 0
    %802 = vmatprep.subr.bf16.mxu0 0
    %803 = vmatpush1.bf16.msra.mxu0 0
    %804 = vmatprep.subr.bf16.mxu0 0
    %805 = vmatpush1.bf16.msra.mxu0 0
    %806 = vmatprep.subr.bf16.mxu0 0
    %807 = vmatpush1.bf16.msra.mxu0 0
    %808 = vmatprep.subr.bf16.mxu0 0
    %809 = vmatpush1.bf16.msra.mxu0 0
    %810 = vmatprep.subr.bf16.mxu0 0
    %811 = vmatpush1.bf16.msra.mxu0 %v693
    %812 = vmatprep.subr.bf16.mxu0 0
    %813 = vmatpush1.bf16.msra.mxu0 %v692
    %814 = vmatprep.subr.bf16.mxu0 0
    %815 = vmatpush2.bf16.msra.mxu0 0
    %816 = vmatprep.subr.bf16.mxu0 0
    %817 = vmatpush2.bf16.msra.mxu0 0
    %818 = vmatprep.subr.bf16.mxu0 0
    %819 = vmatpush2.bf16.msra.mxu0 0
    %820 = vmatprep.subr.bf16.mxu0 0
    %821 = vmatpush2.bf16.msra.mxu0 0
    %822 = vmatprep.subr.bf16.mxu0 0
    %823 = vmatpush2.bf16.msra.mxu0 0
    %824 = vmatprep.subr.bf16.mxu0 0
    %825 = vmatpush2.bf16.msra.mxu0 0
    %826 = vmatprep.subr.bf16.mxu0 0
    %827 = vmatpush2.bf16.msra.mxu0 0
    %828 = vmatprep.subr.bf16.mxu0 0
    %829 = vmatpush2.bf16.msra.mxu0 0
    %830 = vmatprep.mubr.bf16.mxu0 0
    %831 = vmatmul.mubr.bf16.gmra.mxu0 %v53
    %v832 = vpop.f32.mrf.mxu0
    %v833 = vadd.f32 %v796, %v832
    %v834 = vpop.f32.mrf.mxu0
    %v835 = vpop.f32.mrf.mxu0
    %v836 = vpop.f32.mrf.mxu0
    %837 = vdwg.mxu0
    %v838 = vmul.f32 %v737, 0.35355338
    %v839 = vpack.c.bf16 %v838, %v838
    %v840 = vpack.c.bf16 %v785, %v785
    %v842 = vsel %vm194, %v839, 0
    %v845 = vsel %vm194, %v840, 0
    %847 = vmatprep.subr.bf16.mxu0 0
    %848 = vmatpush1.bf16.xpose.msra.mxu0 0
    %849 = vmatprep.subr.bf16.mxu0 0
    %850 = vmatpush1.bf16.xpose.msra.mxu0 0
    %851 = vmatprep.subr.bf16.mxu0 0
    %852 = vmatpush1.bf16.xpose.msra.mxu0 0
    %853 = vmatprep.subr.bf16.mxu0 0
    %854 = vmatpush1.bf16.xpose.msra.mxu0 0
    %855 = vmatprep.subr.bf16.mxu0 0
    %856 = vmatpush1.bf16.xpose.msra.mxu0 0
    %857 = vmatprep.subr.bf16.mxu0 0
    %858 = vmatpush1.bf16.xpose.msra.mxu0 0
    %859 = vmatprep.subr.bf16.mxu0 0
    %860 = vmatpush1.bf16.xpose.msra.mxu0 0
    %861 = vmatprep.subr.bf16.mxu0 0
    %862 = vmatpush1.bf16.xpose.msra.mxu0 %v845
    %863 = vmatprep.subr.bf16.mxu0 0
    %864 = vmatpush2.bf16.xpose.msra.mxu0 0
    %865 = vmatprep.subr.bf16.mxu0 0
    %866 = vmatpush2.bf16.xpose.msra.mxu0 0
    %867 = vmatprep.subr.bf16.mxu0 0
    %868 = vmatpush2.bf16.xpose.msra.mxu0 0
    %869 = vmatprep.subr.bf16.mxu0 0
    %870 = vmatpush2.bf16.xpose.msra.mxu0 0
    %871 = vmatprep.subr.bf16.mxu0 0
    %872 = vmatpush2.bf16.xpose.msra.mxu0 0
    %873 = vmatprep.subr.bf16.mxu0 0
    %874 = vmatpush2.bf16.xpose.msra.mxu0 0
    %875 = vmatprep.subr.bf16.mxu0 0
    %876 = vmatpush2.bf16.xpose.msra.mxu0 0
    %877 = vmatprep.subr.bf16.mxu0 0
    %878 = vmatpush2.bf16.xpose.msra.mxu0 0
    %879 = vmatprep.mubr.bf16.mxu0 0
    %880 = vmatmul.mubr.bf16.gmra.mxu0 %v842
    %v881 = vpop.f32.mrf.mxu0
    %v882 = vadd.f32 0.0, %v881
    %v883 = vpop.f32.mrf.mxu0
    %v884 = vpop.f32.mrf.mxu0
    %v885 = vpop.f32.mrf.mxu0
    %886 = vdwg.mxu0
    %v887 = vsel %vm194, %v882, -inf
    %888 = vmax.xlane.f32.xlu0 %v887
    %v889 = vpop.xlane.xlu0 %888
    %v890 = vsub.f32 %v882, %v889
    %v891 = vmul.f32 %v890, 1.442695
    %v892 = vpow.pop %v891
    %v893 = vsel %vm194, %v892, 0.0
    %894 = vadd.xlane.f32.xlu0 %v893
    %v895 = vpop.xlane.xlu0 %894
    %v896 = vrcp.pop %v895
    %v897 = vmul.f32 %v892, %v896
    %v898 = vpack.c.bf16 %v897, %v897
    %v899 = vpack.c.bf16 %v833, %v833
    %v901 = vsel %vm194, %v898, 0
    %v904 = vsel %vm257, %v899, 0
    %906 = vmatprep.subr.bf16.mxu0 0
    %907 = vmatpush1.bf16.msra.mxu0 0
    %908 = vmatprep.subr.bf16.mxu0 0
    %909 = vmatpush1.bf16.msra.mxu0 0
    %910 = vmatprep.subr.bf16.mxu0 0
    %911 = vmatpush1.bf16.msra.mxu0 0
    %912 = vmatprep.subr.bf16.mxu0 0
    %913 = vmatpush1.bf16.msra.mxu0 0
    %914 = vmatprep.subr.bf16.mxu0 0
    %915 = vmatpush1.bf16.msra.mxu0 0
    %916 = vmatprep.subr.bf16.mxu0 0
    %917 = vmatpush1.bf16.msra.mxu0 0
    %918 = vmatprep.subr.bf16.mxu0 0
    %919 = vmatpush1.bf16.msra.mxu0 0
    %920 = vmatprep.subr.bf16.mxu0 0
    %921 = vmatpush1.bf16.msra.mxu0 %v904
    %922 = vmatprep.subr.bf16.mxu0 0
    %923 = vmatpush2.bf16.msra.mxu0 0
    %924 = vmatprep.subr.bf16.mxu0 0
    %925 = vmatpush2.bf16.msra.mxu0 0
    %926 = vmatprep.subr.bf16.mxu0 0
    %927 = vmatpush2.bf16.msra.mxu0 0
    %928 = vmatprep.subr.bf16.mxu0 0
    %929 = vmatpush2.bf16.msra.mxu0 0
    %930 = vmatprep.subr.bf16.mxu0 0
    %931 = vmatpush2.bf16.msra.mxu0 0
    %932 = vmatprep.subr.bf16.mxu0 0
    %933 = vmatpush2.bf16.msra.mxu0 0
    %934 = vmatprep.subr.bf16.mxu0 0
    %935 = vmatpush2.bf16.msra.mxu0 0
    %936 = vmatprep.subr.bf16.mxu0 0
    %937 = vmatpush2.bf16.msra.mxu0 0
    %938 = vmatprep.mubr.bf16.mxu0 0
    %939 = vmatmul.mubr.bf16.gmra.mxu0 %v901
    %v940 = vpop.f32.mrf.mxu0
    %v941 = vadd.f32 0.0, %v940
    %v942 = vpop.f32.mrf.mxu0
    %v943 = vpop.f32.mrf.mxu0
    %v944 = vpop.f32.mrf.mxu0
    %945 = vdwg.mxu0
    %v946 = vpack.c.bf16 %v941, %v941
    %s947 = scalar_lea.vmem %s3, 16
    %v948 = vld [vmem:[%s947] sm:$0xff]
    %v949 = vpack.c.bf16 %v948, %v948
    %v951 = vsel %vm194, %v946, 0
    %v954 = vsel %vm257, %v949, 0
    %956 = vmatprep.subr.bf16.mxu0 0
    %957 = vmatpush1.bf16.msra.mxu0 0
    %958 = vmatprep.subr.bf16.mxu0 0
    %959 = vmatpush1.bf16.msra.mxu0 0
    %960 = vmatprep.subr.bf16.mxu0 0
    %961 = vmatpush1.bf16.msra.mxu0 0
    %962 = vmatprep.subr.bf16.mxu0 0
    %963 = vmatpush1.bf16.msra.mxu0 0
    %964 = vmatprep.subr.bf16.mxu0 0
    %965 = vmatpush1.bf16.msra.mxu0 0
    %966 = vmatprep.subr.bf16.mxu0 0
    %967 = vmatpush1.bf16.msra.mxu0 0
    %968 = vmatprep.subr.bf16.mxu0 0
    %969 = vmatpush1.bf16.msra.mxu0 0
    %970 = vmatprep.subr.bf16.mxu0 0
    %971 = vmatpush1.bf16.msra.mxu0 %v954
    %972 = vmatprep.subr.bf16.mxu0 0
    %973 = vmatpush2.bf16.msra.mxu0 0
    %974 = vmatprep.subr.bf16.mxu0 0
    %975 = vmatpush2.bf16.msra.mxu0 0
    %976 = vmatprep.subr.bf16.mxu0 0
    %977 = vmatpush2.bf16.msra.mxu0 0
    %978 = vmatprep.subr.bf16.mxu0 0
    %979 = vmatpush2.bf16.msra.mxu0 0
    %980 = vmatprep.subr.bf16.mxu0 0
    %981 = vmatpush2.bf16.msra.mxu0 0
    %982 = vmatprep.subr.bf16.mxu0 0
    %983 = vmatpush2.bf16.msra.mxu0 0
    %984 = vmatprep.subr.bf16.mxu0 0
    %985 = vmatpush2.bf16.msra.mxu0 0
    %986 = vmatprep.subr.bf16.mxu0 0
    %987 = vmatpush2.bf16.msra.mxu0 0
    %988 = vmatprep.mubr.bf16.mxu0 0
    %989 = vmatmul.mubr.bf16.gmra.mxu0 %v951
    %v990 = vpop.f32.mrf.mxu0
    %v991 = vadd.f32 0.0, %v990
    %v992 = vpop.f32.mrf.mxu0
    %v993 = vpop.f32.mrf.mxu0
    %v994 = vpop.f32.mrf.mxu0
    %995 = vdwg.mxu0
    %v996 = vadd.f32 %v668, %v991
    %s997 = scalar_lea.vmem %s1, 96
    %v998 = vld [vmem:[%s997] sm:$0xff]
    %v999 = vld [vmem:[%s997 + $0x8] sm:$0xff]
    %v1000 = vld [vmem:[%s997 + $0x10] sm:$0xff]
    %v1001 = vld [vmem:[%s997 + $0x18] sm:$0xff]
    %v1002 = vpack.c.bf16 %v999, %v998
    %v1003 = vpack.c.bf16 %v1001, %v1000
    %s1004 = scalar_lea.vmem %s1, 224
    %v1005 = vld [vmem:[%s1004] sm:$0xff]
    %v1006 = vld [vmem:[%s1004 + $0x8] sm:$0xff]
    %v1007 = vld [vmem:[%s1004 + $0x10] sm:$0xff]
    %v1008 = vld [vmem:[%s1004 + $0x18] sm:$0xff]
    %v1009 = vpack.c.bf16 %v1006, %v1005
    %v1010 = vpack.c.bf16 %v1008, %v1007
    %s1011 = scalar_lea.vmem %s1, 352
    %v1012 = vld [vmem:[%s1011] sm:$0xff]
    %v1013 = vld [vmem:[%s1011 + $0x8] sm:$0xff]
    %v1014 = vld [vmem:[%s1011 + $0x10] sm:$0xff]
    %v1015 = vld [vmem:[%s1011 + $0x18] sm:$0xff]
    %v1016 = vpack.c.bf16 %v1013, %v1012
    %v1017 = vpack.c.bf16 %v1015, %v1014
    %s1018 = scalar_lea.vmem %s2, 3
    %v1019 = vld [vmem:[%s1018] sm:$0x1]
    %v1021 = vlaneseq
    %v1022 = vshrl.u32 %v1021, 7
    %v1023 = vsub.s32 0, %v1022
    %v1024 = vrot.slane %v1019, %v1023
    %1026 = vmatprep.subr.bf16.mxu0 0
    %1027 = vmatpush1.bf16.msra.mxu0 0
    %1028 = vmatprep.subr.bf16.mxu0 0
    %1029 = vmatpush1.bf16.msra.mxu0 0
    %1030 = vmatprep.subr.bf16.mxu0 0
    %1031 = vmatpush1.bf16.msra.mxu0 0
    %1032 = vmatprep.subr.bf16.mxu0 0
    %1033 = vmatpush1.bf16.msra.mxu0 0
    %1034 = vmatprep.subr.bf16.mxu0 0
    %1035 = vmatpush1.bf16.msra.mxu0 0
    %1036 = vmatprep.subr.bf16.mxu0 0
    %1037 = vmatpush1.bf16.msra.mxu0 0
    %1038 = vmatprep.subr.bf16.mxu0 0
    %1039 = vmatpush1.bf16.msra.mxu0 %v1003
    %1040 = vmatprep.subr.bf16.mxu0 0
    %1041 = vmatpush1.bf16.msra.mxu0 %v1002
    %1042 = vmatprep.subr.bf16.mxu0 0
    %1043 = vmatpush2.bf16.msra.mxu0 0
    %1044 = vmatprep.subr.bf16.mxu0 0
    %1045 = vmatpush2.bf16.msra.mxu0 0
    %1046 = vmatprep.subr.bf16.mxu0 0
    %1047 = vmatpush2.bf16.msra.mxu0 0
    %1048 = vmatprep.subr.bf16.mxu0 0
    %1049 = vmatpush2.bf16.msra.mxu0 0
    %1050 = vmatprep.subr.bf16.mxu0 0
    %1051 = vmatpush2.bf16.msra.mxu0 0
    %1052 = vmatprep.subr.bf16.mxu0 0
    %1053 = vmatpush2.bf16.msra.mxu0 0
    %1054 = vmatprep.subr.bf16.mxu0 0
    %1055 = vmatpush2.bf16.msra.mxu0 0
    %1056 = vmatprep.subr.bf16.mxu0 0
    %1057 = vmatpush2.bf16.msra.mxu0 0
    %1058 = vmatprep.mubr.bf16.mxu0 0
    %1059 = vmatmul.mubr.bf16.gmra.mxu0 %v53
    %v1060 = vpop.f32.mrf.mxu0
    %v1061 = vadd.f32 %v1024, %v1060
    %v1062 = vpop.f32.mrf.mxu0
    %v1063 = vpop.f32.mrf.mxu0
    %v1064 = vpop.f32.mrf.mxu0
    %1065 = vdwg.mxu0
    %s1066 = scalar_lea.vmem %s2, 7
    %v1067 = vld [vmem:[%s1066] sm:$0x1]
    %v1069 = vlaneseq
    %v1070 = vshrl.u32 %v1069, 7
    %v1071 = vsub.s32 0, %v1070
    %v1072 = vrot.slane %v1067, %v1071
    %1074 = vmatprep.subr.bf16.mxu0 0
    %1075 = vmatpush1.bf16.msra.mxu0 0
    %1076 = vmatprep.subr.bf16.mxu0 0
    %1077 = vmatpush1.bf16.msra.mxu0 0
    %1078 = vmatprep.subr.bf16.mxu0 0
    %1079 = vmatpush1.bf16.msra.mxu0 0
    %1080 = vmatprep.subr.bf16.mxu0 0
    %1081 = vmatpush1.bf16.msra.mxu0 0
    %1082 = vmatprep.subr.bf16.mxu0 0
    %1083 = vmatpush1.bf16.msra.mxu0 0
    %1084 = vmatprep.subr.bf16.mxu0 0
    %1085 = vmatpush1.bf16.msra.mxu0 0
    %1086 = vmatprep.subr.bf16.mxu0 0
    %1087 = vmatpush1.bf16.msra.mxu0 %v1010
    %1088 = vmatprep.subr.bf16.mxu0 0
    %1089 = vmatpush1.bf16.msra.mxu0 %v1009
    %1090 = vmatprep.subr.bf16.mxu0 0
    %1091 = vmatpush2.bf16.msra.mxu0 0
    %1092 = vmatprep.subr.bf16.mxu0 0
    %1093 = vmatpush2.bf16.msra.mxu0 0
    %1094 = vmatprep.subr.bf16.mxu0 0
    %1095 = vmatpush2.bf16.msra.mxu0 0
    %1096 = vmatprep.subr.bf16.mxu0 0
    %1097 = vmatpush2.bf16.msra.mxu0 0
    %1098 = vmatprep.subr.bf16.mxu0 0
    %1099 = vmatpush2.bf16.msra.mxu0 0
    %1100 = vmatprep.subr.bf16.mxu0 0
    %1101 = vmatpush2.bf16.msra.mxu0 0
    %1102 = vmatprep.subr.bf16.mxu0 0
    %1103 = vmatpush2.bf16.msra.mxu0 0
    %1104 = vmatprep.subr.bf16.mxu0 0
    %1105 = vmatpush2.bf16.msra.mxu0 0
    %1106 = vmatprep.mubr.bf16.mxu0 0
    %1107 = vmatmul.mubr.bf16.gmra.mxu0 %v53
    %v1108 = vpop.f32.mrf.mxu0
    %v1109 = vadd.f32 %v1072, %v1108
    %v1110 = vpop.f32.mrf.mxu0
    %v1111 = vpop.f32.mrf.mxu0
    %v1112 = vpop.f32.mrf.mxu0
    %1113 = vdwg.mxu0
    %s1114 = scalar_lea.vmem %s2, 11
    %v1115 = vld [vmem:[%s1114] sm:$0x1]
    %v1117 = vlaneseq
    %v1118 = vshrl.u32 %v1117, 7
    %v1119 = vsub.s32 0, %v1118
    %v1120 = vrot.slane %v1115, %v1119
    %1122 = vmatprep.subr.bf16.mxu0 0
    %1123 = vmatpush1.bf16.msra.mxu0 0
    %1124 = vmatprep.subr.bf16.mxu0 0
    %1125 = vmatpush1.bf16.msra.mxu0 0
    %1126 = vmatprep.subr.bf16.mxu0 0
    %1127 = vmatpush1.bf16.msra.mxu0 0
    %1128 = vmatprep.subr.bf16.mxu0 0
    %1129 = vmatpush1.bf16.msra.mxu0 0
    %1130 = vmatprep.subr.bf16.mxu0 0
    %1131 = vmatpush1.bf16.msra.mxu0 0
    %1132 = vmatprep.subr.bf16.mxu0 0
    %1133 = vmatpush1.bf16.msra.mxu0 0
    %1134 = vmatprep.subr.bf16.mxu0 0
    %1135 = vmatpush1.bf16.msra.mxu0 %v1017
    %1136 = vmatprep.subr.bf16.mxu0 0
    %1137 = vmatpush1.bf16.msra.mxu0 %v1016
    %1138 = vmatprep.subr.bf16.mxu0 0
    %1139 = vmatpush2.bf16.msra.mxu0 0
    %1140 = vmatprep.subr.bf16.mxu0 0
    %1141 = vmatpush2.bf16.msra.mxu0 0
    %1142 = vmatprep.subr.bf16.mxu0 0
    %1143 = vmatpush2.bf16.msra.mxu0 0
    %1144 = vmatprep.subr.bf16.mxu0 0
    %1145 = vmatpush2.bf16.msra.mxu0 0
    %1146 = vmatprep.subr.bf16.mxu0 0
    %1147 = vmatpush2.bf16.msra.mxu0 0
    %1148 = vmatprep.subr.bf16.mxu0 0
    %1149 = vmatpush2.bf16.msra.mxu0 0
    %1150 = vmatprep.subr.bf16.mxu0 0
    %1151 = vmatpush2.bf16.msra.mxu0 0
    %1152 = vmatprep.subr.bf16.mxu0 0
    %1153 = vmatpush2.bf16.msra.mxu0 0
    %1154 = vmatprep.mubr.bf16.mxu0 0
    %1155 = vmatmul.mubr.bf16.gmra.mxu0 %v53
    %v1156 = vpop.f32.mrf.mxu0
    %v1157 = vadd.f32 %v1120, %v1156
    %v1158 = vpop.f32.mrf.mxu0
    %v1159 = vpop.f32.mrf.mxu0
    %v1160 = vpop.f32.mrf.mxu0
    %1161 = vdwg.mxu0
    %v1162 = vmul.f32 %v1061, 0.35355338
    %v1163 = vpack.c.bf16 %v1162, %v1162
    %v1164 = vpack.c.bf16 %v1109, %v1109
    %v1166 = vsel %vm194, %v1163, 0
    %v1169 = vsel %vm194, %v1164, 0
    %1171 = vmatprep.subr.bf16.mxu0 0
    %1172 = vmatpush1.bf16.xpose.msra.mxu0 0
    %1173 = vmatprep.subr.bf16.mxu0 0
    %1174 = vmatpush1.bf16.xpose.msra.mxu0 0
    %1175 = vmatprep.subr.bf16.mxu0 0
    %1176 = vmatpush1.bf16.xpose.msra.mxu0 0
    %1177 = vmatprep.subr.bf16.mxu0 0
    %1178 = vmatpush1.bf16.xpose.msra.mxu0 0
    %1179 = vmatprep.subr.bf16.mxu0 0
    %1180 = vmatpush1.bf16.xpose.msra.mxu0 0
    %1181 = vmatprep.subr.bf16.mxu0 0
    %1182 = vmatpush1.bf16.xpose.msra.mxu0 0
    %1183 = vmatprep.subr.bf16.mxu0 0
    %1184 = vmatpush1.bf16.xpose.msra.mxu0 0
    %1185 = vmatprep.subr.bf16.mxu0 0
    %1186 = vmatpush1.bf16.xpose.msra.mxu0 %v1169
    %1187 = vmatprep.subr.bf16.mxu0 0
    %1188 = vmatpush2.bf16.xpose.msra.mxu0 0
    %1189 = vmatprep.subr.bf16.mxu0 0
    %1190 = vmatpush2.bf16.xpose.msra.mxu0 0
    %1191 = vmatprep.subr.bf16.mxu0 0
    %1192 = vmatpush2.bf16.xpose.msra.mxu0 0
    %1193 = vmatprep.subr.bf16.mxu0 0
    %1194 = vmatpush2.bf16.xpose.msra.mxu0 0
    %1195 = vmatprep.subr.bf16.mxu0 0
    %1196 = vmatpush2.bf16.xpose.msra.mxu0 0
    %1197 = vmatprep.subr.bf16.mxu0 0
    %1198 = vmatpush2.bf16.xpose.msra.mxu0 0
    %1199 = vmatprep.subr.bf16.mxu0 0
    %1200 = vmatpush2.bf16.xpose.msra.mxu0 0
    %1201 = vmatprep.subr.bf16.mxu0 0
    %1202 = vmatpush2.bf16.xpose.msra.mxu0 0
    %1203 = vmatprep.mubr.bf16.mxu0 0
    %1204 = vmatmul.mubr.bf16.gmra.mxu0 %v1166
    %v1205 = vpop.f32.mrf.mxu0
    %v1206 = vadd.f32 0.0, %v1205
    %v1207 = vpop.f32.mrf.mxu0
    %v1208 = vpop.f32.mrf.mxu0
    %v1209 = vpop.f32.mrf.mxu0
    %1210 = vdwg.mxu0
    %v1211 = vsel %vm194, %v1206, -inf
    %1212 = vmax.xlane.f32.xlu0 %v1211
    %v1213 = vpop.xlane.xlu0 %1212
    %v1214 = vsub.f32 %v1206, %v1213
    %v1215 = vmul.f32 %v1214, 1.442695
    %v1216 = vpow.pop %v1215
    %v1217 = vsel %vm194, %v1216, 0.0
    %1218 = vadd.xlane.f32.xlu0 %v1217
    %v1219 = vpop.xlane.xlu0 %1218
    %v1220 = vrcp.pop %v1219
    %v1221 = vmul.f32 %v1216, %v1220
    %v1222 = vpack.c.bf16 %v1221, %v1221
    %v1223 = vpack.c.bf16 %v1157, %v1157
    %v1225 = vsel %vm194, %v1222, 0
    %v1228 = vsel %vm257, %v1223, 0
    %1230 = vmatprep.subr.bf16.mxu0 0
    %1231 = vmatpush1.bf16.msra.mxu0 0
    %1232 = vmatprep.subr.bf16.mxu0 0
    %1233 = vmatpush1.bf16.msra.mxu0 0
    %1234 = vmatprep.subr.bf16.mxu0 0
    %1235 = vmatpush1.bf16.msra.mxu0 0
    %1236 = vmatprep.subr.bf16.mxu0 0
    %1237 = vmatpush1.bf16.msra.mxu0 0
    %1238 = vmatprep.subr.bf16.mxu0 0
    %1239 = vmatpush1.bf16.msra.mxu0 0
    %1240 = vmatprep.subr.bf16.mxu0 0
    %1241 = vmatpush1.bf16.msra.mxu0 0
    %1242 = vmatprep.subr.bf16.mxu0 0
    %1243 = vmatpush1.bf16.msra.mxu0 0
    %1244 = vmatprep.subr.bf16.mxu0 0
    %1245 = vmatpush1.bf16.msra.mxu0 %v1228
    %1246 = vmatprep.subr.bf16.mxu0 0
    %1247 = vmatpush2.bf16.msra.mxu0 0
    %1248 = vmatprep.subr.bf16.mxu0 0
    %1249 = vmatpush2.bf16.msra.mxu0 0
    %1250 = vmatprep.subr.bf16.mxu0 0
    %1251 = vmatpush2.bf16.msra.mxu0 0
    %1252 = vmatprep.subr.bf16.mxu0 0
    %1253 = vmatpush2.bf16.msra.mxu0 0
    %1254 = vmatprep.subr.bf16.mxu0 0
    %1255 = vmatpush2.bf16.msra.mxu0 0
    %1256 = vmatprep.subr.bf16.mxu0 0
    %1257 = vmatpush2.bf16.msra.mxu0 0
    %1258 = vmatprep.subr.bf16.mxu0 0
    %1259 = vmatpush2.bf16.msra.mxu0 0
    %1260 = vmatprep.subr.bf16.mxu0 0
    %1261 = vmatpush2.bf16.msra.mxu0 0
    %1262 = vmatprep.mubr.bf16.mxu0 0
    %1263 = vmatmul.mubr.bf16.gmra.mxu0 %v1225
    %v1264 = vpop.f32.mrf.mxu0
    %v1265 = vadd.f32 0.0, %v1264
    %v1266 = vpop.f32.mrf.mxu0
    %v1267 = vpop.f32.mrf.mxu0
    %v1268 = vpop.f32.mrf.mxu0
    %1269 = vdwg.mxu0
    %v1270 = vpack.c.bf16 %v1265, %v1265
    %s1271 = scalar_lea.vmem %s3, 24
    %v1272 = vld [vmem:[%s1271] sm:$0xff]
    %v1273 = vpack.c.bf16 %v1272, %v1272
    %v1275 = vsel %vm194, %v1270, 0
    %v1278 = vsel %vm257, %v1273, 0
    %1280 = vmatprep.subr.bf16.mxu0 0
    %1281 = vmatpush1.bf16.msra.mxu0 0
    %1282 = vmatprep.subr.bf16.mxu0 0
    %1283 = vmatpush1.bf16.msra.mxu0 0
    %1284 = vmatprep.subr.bf16.mxu0 0
    %1285 = vmatpush1.bf16.msra.mxu0 0
    %1286 = vmatprep.subr.bf16.mxu0 0
    %1287 = vmatpush1.bf16.msra.mxu0 0
    %1288 = vmatprep.subr.bf16.mxu0 0
    %1289 = vmatpush1.bf16.msra.mxu0 0
    %1290 = vmatprep.subr.bf16.mxu0 0
    %1291 = vmatpush1.bf16.msra.mxu0 0
    %1292 = vmatprep.subr.bf16.mxu0 0
    %1293 = vmatpush1.bf16.msra.mxu0 0
    %1294 = vmatprep.subr.bf16.mxu0 0
    %1295 = vmatpush1.bf16.msra.mxu0 %v1278
    %1296 = vmatprep.subr.bf16.mxu0 0
    %1297 = vmatpush2.bf16.msra.mxu0 0
    %1298 = vmatprep.subr.bf16.mxu0 0
    %1299 = vmatpush2.bf16.msra.mxu0 0
    %1300 = vmatprep.subr.bf16.mxu0 0
    %1301 = vmatpush2.bf16.msra.mxu0 0
    %1302 = vmatprep.subr.bf16.mxu0 0
    %1303 = vmatpush2.bf16.msra.mxu0 0
    %1304 = vmatprep.subr.bf16.mxu0 0
    %1305 = vmatpush2.bf16.msra.mxu0 0
    %1306 = vmatprep.subr.bf16.mxu0 0
    %1307 = vmatpush2.bf16.msra.mxu0 0
    %1308 = vmatprep.subr.bf16.mxu0 0
    %1309 = vmatpush2.bf16.msra.mxu0 0
    %1310 = vmatprep.subr.bf16.mxu0 0
    %1311 = vmatpush2.bf16.msra.mxu0 0
    %1312 = vmatprep.mubr.bf16.mxu0 0
    %1313 = vmatmul.mubr.bf16.gmra.mxu0 %v1275
    %v1314 = vpop.f32.mrf.mxu0
    %v1315 = vadd.f32 0.0, %v1314
    %v1316 = vpop.f32.mrf.mxu0
    %v1317 = vpop.f32.mrf.mxu0
    %v1318 = vpop.f32.mrf.mxu0
    %1319 = vdwg.mxu0
    %v1320 = vadd.f32 %v996, %v1315
    %v1321 = vld [vmem:[%s4] sm:$0x1]
    %v1323 = vlaneseq
    %v1324 = vshrl.u32 %v1323, 7
    %v1325 = vsub.s32 0, %v1324
    %v1326 = vrot.slane %v1321, %v1325
    %v1328 = vadd.f32 %v1320, %v1326
    %1329 = vst.msk [vmem:[#allocation2] sm:$0xff] %vm51, %v1328
    // Predicated region
    $region22: #{tpu_custom_call.1} parent=1 // pred_check
      _
    $region23: #{tpu_custom_call.1} parent=1 // pred_check_branch
      %1331 = sbr.rel (0) target = $region25
    $region24: #{tpu_custom_call.1} parent=1 // pred_region
      %s1333 = ssub.s32 128, 128
      %1334 = vsyncadd [#allocation3], %s1333
      %s1336 = sshll.u32 [#allocation2], 4
      %s1337 = int_to_ptr.vmem [resolvable:$true] %s1336
      %1339 = dma.vmem_to_hbm [thread:$0]  %s1337, 128, %s5, [#allocation3]
    $region25: #{tpu_custom_call.1} parent=1 // pred_fallthru
      _
    // Predicated region
    $region26: #{tpu_custom_call.1} parent=1 // pred_check
      _
    $region27: #{tpu_custom_call.1} parent=1 // pred_check_branch
      %1341 = sbr.rel (0) target = $region29
    $region28: #{tpu_custom_call.1} parent=1 // pred_region
      %1342 = dma.done [#allocation3], 128
    $region29: #{tpu_custom_call.1} parent=1 // pred_fallthru
      _
    %1343 = vsyncpa [#allocation3], 1

</llo_original>
